<compile_context>
chip_gen: v6e
topology: v6e:2x2x1
jax: 0.10.0
libtpu: 0.0.40
codegen_flags: <defaults>
</compile_context>

<pallas_src>
import functools

import jax
import jax.numpy as jnp
from jax.experimental import pallas as pl
from jax.experimental.pallas import tpu as pltpu

_LANE = 128


def _round_up(v, m):
    return ((v + m - 1) // m) * m


def _choose_tiles(n):
    """(dest_tile, source/reduction_tile, padded N)."""
    if n <= 1024:
        ti = tk = 128
    else:
        ti, tk = 256, 512
    n_pad = _round_up(n, max(ti, tk))
    return ti, tk, n_pad


# ---------------------------------------------------------------------------
# Kernel 1: per-node projection  X @ [(1-a)W_in | a*W_out | W_root] (+ bias)
# ---------------------------------------------------------------------------
def _project_kernel(x_ref, w_ref, b_ref, agg_ref, root_ref, *, two_fout):
    xw = jnp.dot(x_ref[...], w_ref[...], preferred_element_type=jnp.float32)
    agg_ref[...] = xw[:, :two_fout].astype(agg_ref.dtype)      # bf16, feeds MXU
    root_ref[...] = xw[:, two_fout:] + b_ref[...]               # f32 acc init


def _project(x, w_all, b, *, tm):
    n_pad, f_in = x.shape
    three_fout = w_all.shape[1]
    fout = three_fout // 3
    return pl.pallas_call(
        functools.partial(_project_kernel, two_fout=2 * fout),
        out_shape=(jax.ShapeDtypeStruct((n_pad, 2 * fout), jnp.bfloat16),
                   jax.ShapeDtypeStruct((n_pad, fout), jnp.float32)),
        grid=(n_pad // tm,),
        in_specs=[
            pl.BlockSpec((tm, f_in), lambda i: (i, 0)),          # node tile
            pl.BlockSpec((f_in, three_fout), lambda i: (0, 0)),  # packed weights
            pl.BlockSpec((1, fout), lambda i: (0, 0)),           # combined bias
        ],
        out_specs=(pl.BlockSpec((tm, 2 * fout), lambda i: (i, 0)),
                   pl.BlockSpec((tm, fout), lambda i: (i, 0))),
        compiler_params=pltpu.CompilerParams(
            dimension_semantics=("parallel",),
            vmem_limit_bytes=32 * 1024 * 1024),
    )(x, w_all, b)


# ---------------------------------------------------------------------------
# Kernel 2/3: dual-direction aggregation with fused tail (next-layer
# projection, or the final fc) in the finalize step.
# ---------------------------------------------------------------------------
def _agg_step(k, xw_ref, root_ref, a_in_ref, a_out_ref, acc_ref, fout):
    @pl.when(k == 0)
    def _():
        acc_ref[...] = root_ref[...]          # root/skip + bias already folded

    xw = xw_ref[...]                          # (tk, 2*fout) bf16
    acc_ref[...] += (
        jnp.dot(a_in_ref[...], xw[:, :fout], preferred_element_type=jnp.float32)
        + jnp.dot(a_out_ref[...], xw[:, fout:],
                  preferred_element_type=jnp.float32))


def _agg_project_kernel(xw_ref, root_ref, a_in_ref, a_out_ref, w_ref, b_ref,
                        agg_o_ref, root_o_ref, acc_ref, *, fout, two_fout_nxt):
    k = pl.program_id(1)
    _agg_step(k, xw_ref, root_ref, a_in_ref, a_out_ref, acc_ref, fout)

    @pl.when(k == pl.num_programs(1) - 1)
    def _():
        # ReLU, then project straight into the next layer's packed weights so
        # raw hidden activations never leave VMEM.  (dropout = identity, eval)
        h = jnp.maximum(acc_ref[...], 0.0).astype(jnp.bfloat16)
        hw = jnp.dot(h, w_ref[...], preferred_element_type=jnp.float32)
        agg_o_ref[...] = hw[:, :two_fout_nxt].astype(agg_o_ref.dtype)
        root_o_ref[...] = hw[:, two_fout_nxt:] + b_ref[...]


def _agg_fc_kernel(xw_ref, root_ref, a_in_ref, a_out_ref, w_ref, b_ref,
                   o_ref, acc_ref, *, fout):
    k = pl.program_id(1)
    _agg_step(k, xw_ref, root_ref, a_in_ref, a_out_ref, acc_ref, fout)

    @pl.when(k == pl.num_programs(1) - 1)
    def _():
        h = jnp.maximum(acc_ref[...], 0.0).astype(jnp.bfloat16)
        o_ref[...] = (jnp.dot(h, w_ref[...], preferred_element_type=jnp.float32)
                      + b_ref[...])


def _aggregate(xw_agg, xw_root, a_in, a_out, tail_w, tail_b, *, ti, tk,
               fuse_next_projection):
    n_pad, two_fout = xw_agg.shape
    fout = two_fout // 2
    grid = (n_pad // ti, n_pad // tk)

    in_specs = [
        pl.BlockSpec((tk, two_fout), lambda i, k: (k, 0)),  # projected src feats
        pl.BlockSpec((ti, fout), lambda i, k: (i, 0)),      # dest root init (per-i)
        pl.BlockSpec((ti, tk), lambda i, k: (i, k)),        # A_in tile
        pl.BlockSpec((ti, tk), lambda i, k: (i, k)),        # A_out tile
        pl.BlockSpec(tail_w.shape, lambda i, k: (0, 0)),    # fused tail weight
        pl.BlockSpec(tail_b.shape, lambda i, k: (0, 0)),    # fused tail bias
    ]

    if fuse_next_projection:
        fout_nxt = tail_w.shape[1] // 3
        kernel = functools.partial(_agg_project_kernel, fout=fout,
                                   two_fout_nxt=2 * fout_nxt)
        out_shape = (jax.ShapeDtypeStruct((n_pad, 2 * fout_nxt), jnp.bfloat16),
                     jax.ShapeDtypeStruct((n_pad, fout_nxt), jnp.float32))
        out_specs = (pl.BlockSpec((ti, 2 * fout_nxt), lambda i, k: (i, 0)),
                     pl.BlockSpec((ti, fout_nxt), lambda i, k: (i, 0)))
    else:
        c_pad = tail_w.shape[1]
        kernel = functools.partial(_agg_fc_kernel, fout=fout)
        out_shape = jax.ShapeDtypeStruct((n_pad, c_pad), jnp.float32)
        out_specs = pl.BlockSpec((ti, c_pad), lambda i, k: (i, 0))

    return pl.pallas_call(
        kernel,
        out_shape=out_shape,
        grid=grid,
        in_specs=in_specs,
        out_specs=out_specs,
        scratch_shapes=[pltpu.VMEM((ti, fout), jnp.float32)],
        compiler_params=pltpu.CompilerParams(
            dimension_semantics=("parallel", "arbitrary"),
            vmem_limit_bytes=32 * 1024 * 1024),
    )(xw_agg, xw_root, a_in, a_out, tail_w, tail_b)


# ---------------------------------------------------------------------------
# Glue: dense GCN-normalized adjacency (symmetric norm, no self loops)
# ---------------------------------------------------------------------------
def gcn_norm_dense(edge_index, num_nodes, edge_weight=None):
    row, col = edge_index[0], edge_index[1]          # source -> target
    if edge_weight is None:
        edge_weight = jnp.ones((edge_index.shape[1],), jnp.float32)
    deg = jnp.zeros((num_nodes,), jnp.float32).at[col].add(edge_weight)
    deg_inv_sqrt = jnp.where(deg > 0.0, 1.0 / jnp.sqrt(deg), 0.0)
    norm = deg_inv_sqrt[row] * edge_weight * deg_inv_sqrt[col]
    # out[i] = sum over edges j->i of norm_e * x[j]  =>  A[target, source]
    return jnp.zeros((num_nodes, num_nodes), jnp.float32).at[col, row].add(norm)


# ---------------------------------------------------------------------------
# Parameter init (logical, unpadded f32) and one-time packing for the kernel
# ---------------------------------------------------------------------------
def _glorot(key, fan_in, fan_out):
    limit = jnp.sqrt(6.0 / (fan_in + fan_out))
    return jax.random.uniform(key, (fan_in, fan_out), jnp.float32,
                              -limit, limit)


def _dir_layer_params(key, fan_in, fan_out):
    k = jax.random.split(key, 4)
    return {
        "w_in":   _glorot(k[0], fan_in, fan_out),
        "b_in":   jnp.zeros((1, fan_out), jnp.float32),
        "w_out":  _glorot(k[1], fan_in, fan_out),
        "b_out":  jnp.zeros((1, fan_out), jnp.float32),
        "w_root": _glorot(k[2], fan_in, fan_out),
        "b_root": 0.01 * jax.random.normal(k[3], (1, fan_out), jnp.float32),
    }


def init_params(key, num_features, num_classes):
    k1, k2, k3, k4 = jax.random.split(key, 4)
    return {
        "conv1": _dir_layer_params(k1, num_features, 64),
        "conv2": _dir_layer_params(k2, 64, 100),
        "fc_w":  _glorot(k3, 100, num_classes),
        "fc_b":  0.01 * jax.random.normal(k4, (1, num_classes), jnp.float32),
    }


def pack_params(params, num_features, *, alpha=0.5):
    """Fold alpha, pack [W_in|W_out|W_root], pad to 128 lanes, cast bf16."""
    f_pad = _round_up(num_features, _LANE)
    h1, h1p = 64, _round_up(64, _LANE)
    h2, h2p = 100, _round_up(100, _LANE)
    c = params["fc_w"].shape[1]
    c_pad = _round_up(c, _LANE)

    def pack_layer(p, fi, fi_p, fo, fo_p):
        w_all = jnp.zeros((fi_p, 3 * fo_p), jnp.float32)
        w_all = w_all.at[:fi, :fo].set((1.0 - alpha) * p["w_in"])
        w_all = w_all.at[:fi, fo_p:fo_p + fo].set(alpha * p["w_out"])
        w_all = w_all.at[:fi, 2 * fo_p:2 * fo_p + fo].set(p["w_root"])
        bias = (1.0 - alpha) * p["b_in"] + alpha * p["b_out"] + p["b_root"]
        b_pad = jnp.zeros((1, fo_p), jnp.float32).at[:, :fo].set(bias)
        return {"w": w_all.astype(jnp.bfloat16), "b": b_pad}

    fc_w = jnp.zeros((h2p, c_pad), jnp.float32).at[:h2, :c].set(params["fc_w"])
    fc_b = jnp.zeros((1, c_pad), jnp.float32).at[:, :c].set(params["fc_b"])
    return {
        "conv1": pack_layer(params["conv1"], num_features, f_pad, h1, h1p),
        "conv2": pack_layer(params["conv2"], h1, h1p, h2, h2p),
        "fc": {"w": fc_w.astype(jnp.bfloat16), "b": fc_b},
    }


# ---------------------------------------------------------------------------
# Full forward pass
# ---------------------------------------------------------------------------
def mini_gnn_forward(packed, x, edge_index, edge_weight=None, *, num_classes):
    n, f = x.shape
    ti, tk, n_pad = _choose_tiles(n)
    f_pad = packed["conv1"]["w"].shape[0]

    # TODO(synk): for large sparse graphs replace the dense A with a
    # gather/segment-sum (PrefetchScalarGridSpec) formulation.
    a_in = gcn_norm_dense(edge_index, n, edge_weight)
    a_out = gcn_norm_dense(edge_index[::-1], n, edge_weight)
    pad_n = ((0, n_pad - n), (0, n_pad - n))
    a_in = jnp.pad(a_in, pad_n).astype(jnp.bfloat16)
    a_out = jnp.pad(a_out, pad_n).astype(jnp.bfloat16)
    x_p = jnp.pad(x, ((0, n_pad - n), (0, f_pad - f))).astype(jnp.bfloat16)

    # conv1: project each node once (not once per destination tile).
    xw1, root1 = _project(x_p, packed["conv1"]["w"], packed["conv1"]["b"],
                          tm=ti)
    # conv1 aggregation + ReLU, with conv2's projection fused in the finalize.
    # (dropout p=0.5 between the layers is identity in eval mode)
    xw2, root2 = _aggregate(xw1, root1, a_in, a_out,
                            packed["conv2"]["w"], packed["conv2"]["b"],
                            ti=ti, tk=tk, fuse_next_projection=True)
    # conv2 aggregation + ReLU + final fc fused (dropout identity in eval).
    logits_pad = _aggregate(xw2, root2, a_in, a_out,
                            packed["fc"]["w"], packed["fc"]["b"],
                            ti=ti, tk=tk, fuse_next_projection=False)
    return logits_pad[:n, :num_classes]


# ---------------------------------------------------------------------------
# Pure-JAX reference (same padded / bf16-cast params, f32 math)
# ---------------------------------------------------------------------------
def reference_forward(packed, x, edge_index, num_classes, edge_weight=None):
    n, f = x.shape
    f_pad = packed["conv1"]["w"].shape[0]
    a_in = gcn_norm_dense(edge_index, n, edge_weight)
    a_in = a_in.astype(jnp.bfloat16).astype(jnp.float32)
    a_out = gcn_norm_dense(edge_index[::-1], n, edge_weight)
    a_out = a_out.astype(jnp.bfloat16).astype(jnp.float32)
    h = jnp.pad(x, ((0, 0), (0, f_pad - f)))
    h = h.astype(jnp.bfloat16).astype(jnp.float32)

    def dir_layer(h, lp):
        w = lp["w"].astype(jnp.float32)
        fo_p = w.shape[1] // 3
        out = (a_in @ (h @ w[:, :fo_p]) + a_out @ (h @ w[:, fo_p:2 * fo_p])
               + h @ w[:, 2 * fo_p:] + lp["b"])
        return jax.nn.relu(out)

    h1 = dir_layer(h, packed["conv1"])
    h2 = dir_layer(h1, packed["conv2"])
    logits = h2 @ packed["fc"]["w"].astype(jnp.float32) + packed["fc"]["b"]
    return logits[:, :num_classes]


if __name__ == "__main__":
    NUM_NODES = 16
    NUM_FEATURES = 8
    NUM_CLASSES = 7
    NUM_EDGES = 40

    key = jax.random.PRNGKey(0)
    kx, ke, kp = jax.random.split(key, 3)

    x = jax.random.normal(kx, (NUM_NODES, NUM_FEATURES), jnp.float32)
    edge_index = jax.random.randint(ke, (2, NUM_EDGES), 0, NUM_NODES,
                                    dtype=jnp.int32)
    params = init_params(kp, NUM_FEATURES, NUM_CLASSES)
    packed = pack_params(params, NUM_FEATURES)

    fwd = jax.jit(functools.partial(mini_gnn_forward,
                                    num_classes=NUM_CLASSES))
    logits = fwd(packed, x, edge_index)
    jax.block_until_ready(logits)

    ref = reference_forward(packed, x, edge_index, NUM_CLASSES)
    assert logits.shape == (NUM_NODES, NUM_CLASSES)
    assert jnp.all(jnp.isfinite(logits))
    assert jnp.allclose(logits, ref, atol=1e-1, rtol=1e-1), (
        f"max abs err {jnp.max(jnp.abs(logits - ref))}")
    print("KERNEL_OK")
</pallas_src>

<mosaic_0001>
module attributes {stable_mosaic.version = 11 : i64} {
  func.func private @main(%arg0: i32) attributes {dimension_semantics = [#tpu.dimension_semantics<core_parallel>], iteration_bounds = array<i64: 2>, tpu.core_type = #tpu.core_type<sc_scalar_subcore>, window_params = []} {
    return
  }
}

module attributes {stable_mosaic.version = 11 : i64} {
  func.func private @main(%arg0: i32) attributes {dimension_semantics = [#tpu.dimension_semantics<core_parallel>], iteration_bounds = array<i64: 2>, tpu.core_type = #tpu.core_type<sc_scalar_subcore>, window_params = []} {
    return
  }
}

module attributes {stable_mosaic.version = 11 : i64} {
  func.func @_project_kernel(%arg0: i32, %arg1: memref<128x128xbf16, #tpu.memory_space<vmem>>, %arg2: memref<128x384xbf16, #tpu.memory_space<vmem>>, %arg3: memref<1x128xf32, #tpu.memory_space<vmem>>, %arg4: memref<128x256xbf16, #tpu.memory_space<vmem>>, %arg5: memref<128x128xf32, #tpu.memory_space<vmem>>) attributes {dimension_semantics = [#tpu.dimension_semantics<parallel>], iteration_bounds = array<i64: 1>, scalar_prefetch = 0 : i64, scratch_operands = 0 : i64, tpu.core_type = #tpu.core_type<tc>, window_params = [{transform_indices = @transform_0, window_bounds = array<i64: 128, 128>}, {pipeline_mode = #tpu.pipeline_mode<synchronous>, transform_indices = @transform_1, window_bounds = array<i64: 128, 384>}, {pipeline_mode = #tpu.pipeline_mode<synchronous>, transform_indices = @transform_2, window_bounds = array<i64: 1, 128>}, {transform_indices = @transform_3, window_bounds = array<i64: 128, 256>}, {transform_indices = @transform_4, window_bounds = array<i64: 128, 128>}]} {
    %c0 = arith.constant 0 : index
    %c0_0 = arith.constant 0 : index
    %0 = vector.load %arg1[%c0, %c0_0] : memref<128x128xbf16, #tpu.memory_space<vmem>>, vector<128x128xbf16>
    %c0_1 = arith.constant 0 : index
    %c0_2 = arith.constant 0 : index
    %1 = vector.load %arg2[%c0_1, %c0_2] : memref<128x384xbf16, #tpu.memory_space<vmem>>, vector<128x384xbf16>
    %cst = arith.constant dense<0.000000e+00> : vector<128x384xf32>
    %2 = tpu.matmul %0, %1, %cst {dimension_numbers = #tpu.dot_dimension_numbers<[1], [0], [0], [1], [0, 0, 1, 1], [], []>} : vector<128x128xbf16>, vector<128x384xbf16>, vector<128x384xf32> -> vector<128x384xf32>
    %3 = vector.extract_strided_slice %2 {offsets = [0, 0], sizes = [128, 256], strides = [1, 1]} : vector<128x384xf32> to vector<128x256xf32>
    %4 = arith.truncf %3 : vector<128x256xf32> to vector<128x256xbf16>
    %c0_3 = arith.constant 0 : index
    %c0_4 = arith.constant 0 : index
    %5 = vector.load %arg4[%c0_3, %c0_4] : memref<128x256xbf16, #tpu.memory_space<vmem>>, vector<128x256xbf16>
    tpu.vector_store %arg4[%c0_3, %c0_4], %4 {strides = array<i32>} : memref<128x256xbf16, #tpu.memory_space<vmem>>, vector<128x256xbf16>,
    %6 = vector.extract_strided_slice %2 {offsets = [0, 256], sizes = [128, 128], strides = [1, 1]} : vector<128x384xf32> to vector<128x128xf32>
    %c0_5 = arith.constant 0 : index
    %c0_6 = arith.constant 0 : index
    %7 = vector.load %arg3[%c0_5, %c0_6] : memref<1x128xf32, #tpu.memory_space<vmem>>, vector<1x128xf32>
    %8 = vector.broadcast %7 : vector<1x128xf32> to vector<128x128xf32>
    %9 = arith.addf %6, %8 : vector<128x128xf32>
    %c0_7 = arith.constant 0 : index
    %c0_8 = arith.constant 0 : index
    %10 = vector.load %arg5[%c0_7, %c0_8] : memref<128x128xf32, #tpu.memory_space<vmem>>, vector<128x128xf32>
    tpu.vector_store %arg5[%c0_7, %c0_8], %9 {strides = array<i32>} : memref<128x128xf32, #tpu.memory_space<vmem>>, vector<128x128xf32>,
    return
  }
  func.func @transform_0(%arg0: i32) -> (i32, i32) {
    %c0_i32 = arith.constant 0 : i32
    %c0_i32_0 = arith.constant 0 : i32
    return %arg0, %c0_i32 : i32, i32
  }
  func.func @transform_1(%arg0: i32) -> (i32, i32) {
    %c0_i32 = arith.constant 0 : i32
    %c0_i32_0 = arith.constant 0 : i32
    %c0_i32_1 = arith.constant 0 : i32
    return %c0_i32, %c0_i32_0 : i32, i32
  }
  func.func @transform_2(%arg0: i32) -> (i32, i32) {
    %c0_i32 = arith.constant 0 : i32
    %c0_i32_0 = arith.constant 0 : i32
    %c0_i32_1 = arith.constant 0 : i32
    return %c0_i32, %c0_i32_0 : i32, i32
  }
  func.func @transform_3(%arg0: i32) -> (i32, i32) {
    %c0_i32 = arith.constant 0 : i32
    %c0_i32_0 = arith.constant 0 : i32
    return %arg0, %c0_i32 : i32, i32
  }
  func.func @transform_4(%arg0: i32) -> (i32, i32) {
    %c0_i32 = arith.constant 0 : i32
    %c0_i32_0 = arith.constant 0 : i32
    return %arg0, %c0_i32 : i32, i32
  }
}

module attributes {stable_mosaic.version = 11 : i64} {
  func.func @_agg_fc_kernel(%arg0: i32, %arg1: i32, %arg2: memref<128x256xbf16, #tpu.memory_space<vmem>>, %arg3: memref<128x128xf32, #tpu.memory_space<vmem>>, %arg4: memref<128x128xbf16, #tpu.memory_space<vmem>>, %arg5: memref<128x128xbf16, #tpu.memory_space<vmem>>, %arg6: memref<128x128xbf16, #tpu.memory_space<vmem>>, %arg7: memref<1x128xf32, #tpu.memory_space<vmem>>, %arg8: memref<128x128xf32, #tpu.memory_space<vmem>>, %arg9: memref<128x128xf32, #tpu.memory_space<vmem>>) attributes {dimension_semantics = [#tpu.dimension_semantics<parallel>, #tpu.dimension_semantics<arbitrary>], iteration_bounds = array<i64: 1, 1>, scalar_prefetch = 0 : i64, scratch_operands = 1 : i64, tpu.core_type = #tpu.core_type<tc>, window_params = [{transform_indices = @transform_0, window_bounds = array<i64: 128, 256>}, {transform_indices = @transform_1, window_bounds = array<i64: 128, 128>}, {transform_indices = @transform_2, window_bounds = array<i64: 128, 128>}, {transform_indices = @transform_3, window_bounds = array<i64: 128, 128>}, {pipeline_mode = #tpu.pipeline_mode<synchronous>, transform_indices = @transform_4, window_bounds = array<i64: 128, 128>}, {pipeline_mode = #tpu.pipeline_mode<synchronous>, transform_indices = @transform_5, window_bounds = array<i64: 1, 128>}, {transform_indices = @transform_6, window_bounds = array<i64: 128, 128>}]} {
    %c0_i32 = arith.constant 0 : i32
    %0 = arith.cmpi eq, %arg1, %c0_i32 : i32
    %1 = arith.extui %0 : i1 to i32
    %c0_i32_0 = arith.constant 0 : i32
    %2 = arith.cmpi ne, %1, %c0_i32_0 : i32
    scf.if %2 {
      %c0_13 = arith.constant 0 : index
      %c0_14 = arith.constant 0 : index
      %17 = vector.load %arg3[%c0_13, %c0_14] : memref<128x128xf32, #tpu.memory_space<vmem>>, vector<128x128xf32>
      %c0_15 = arith.constant 0 : index
      %c0_16 = arith.constant 0 : index
      %18 = vector.load %arg9[%c0_15, %c0_16] : memref<128x128xf32, #tpu.memory_space<vmem>>, vector<128x128xf32>
      tpu.vector_store %arg9[%c0_15, %c0_16], %17 {strides = array<i32>} : memref<128x128xf32, #tpu.memory_space<vmem>>, vector<128x128xf32>,
    } else {
    }
    %c0 = arith.constant 0 : index
    %c0_1 = arith.constant 0 : index
    %3 = vector.load %arg2[%c0, %c0_1] : memref<128x256xbf16, #tpu.memory_space<vmem>>, vector<128x256xbf16>
    %c0_2 = arith.constant 0 : index
    %c0_3 = arith.constant 0 : index
    %4 = vector.load %arg9[%c0_2, %c0_3] : memref<128x128xf32, #tpu.memory_space<vmem>>, vector<128x128xf32>
    %c0_4 = arith.constant 0 : index
    %c0_5 = arith.constant 0 : index
    %5 = vector.load %arg4[%c0_4, %c0_5] : memref<128x128xbf16, #tpu.memory_space<vmem>>, vector<128x128xbf16>
    %6 = vector.extract_strided_slice %3 {offsets = [0, 0], sizes = [128, 128], strides = [1, 1]} : vector<128x256xbf16> to vector<128x128xbf16>
    %cst = arith.constant dense<0.000000e+00> : vector<128x128xf32>
    %7 = tpu.matmul %5, %6, %cst {dimension_numbers = #tpu.dot_dimension_numbers<[1], [0], [0], [1], [0, 0, 1, 1], [], []>} : vector<128x128xbf16>, vector<128x128xbf16>, vector<128x128xf32> -> vector<128x128xf32>
    %c0_6 = arith.constant 0 : index
    %c0_7 = arith.constant 0 : index
    %8 = vector.load %arg5[%c0_6, %c0_7] : memref<128x128xbf16, #tpu.memory_space<vmem>>, vector<128x128xbf16>
    %9 = vector.extract_strided_slice %3 {offsets = [0, 128], sizes = [128, 128], strides = [1, 1]} : vector<128x256xbf16> to vector<128x128xbf16>
    %cst_8 = arith.constant dense<0.000000e+00> : vector<128x128xf32>
    %10 = tpu.matmul %8, %9, %cst_8 {dimension_numbers = #tpu.dot_dimension_numbers<[1], [0], [0], [1], [0, 0, 1, 1], [], []>} : vector<128x128xbf16>, vector<128x128xbf16>, vector<128x128xf32> -> vector<128x128xf32>
    %11 = arith.addf %7, %10 : vector<128x128xf32>
    %12 = arith.addf %4, %11 : vector<128x128xf32>
    %c0_9 = arith.constant 0 : index
    %c0_10 = arith.constant 0 : index
    %13 = vector.load %arg9[%c0_9, %c0_10] : memref<128x128xf32, #tpu.memory_space<vmem>>, vector<128x128xf32>
    tpu.vector_store %arg9[%c0_9, %c0_10], %12 {strides = array<i32>} : memref<128x128xf32, #tpu.memory_space<vmem>>, vector<128x128xf32>,
    %c0_i32_11 = arith.constant 0 : i32
    %14 = arith.cmpi eq, %arg1, %c0_i32_11 : i32
    %15 = arith.extui %14 : i1 to i32
    %c0_i32_12 = arith.constant 0 : i32
    %16 = arith.cmpi ne, %15, %c0_i32_12 : i32
    scf.if %16 {
      %c0_13 = arith.constant 0 : index
      %c0_14 = arith.constant 0 : index
      %17 = vector.load %arg9[%c0_13, %c0_14] : memref<128x128xf32, #tpu.memory_space<vmem>>, vector<128x128xf32>
      %cst_15 = arith.constant 0.000000e+00 : f32
      %18 = vector.broadcast %cst_15 : f32 to vector<128x128xf32>
      %19 = arith.maximumf %17, %18 : vector<128x128xf32>
      %20 = arith.truncf %19 : vector<128x128xf32> to vector<128x128xbf16>
      %c0_16 = arith.constant 0 : index
      %c0_17 = arith.constant 0 : index
      %21 = vector.load %arg6[%c0_16, %c0_17] : memref<128x128xbf16, #tpu.memory_space<vmem>>, vector<128x128xbf16>
      %cst_18 = arith.constant dense<0.000000e+00> : vector<128x128xf32>
      %22 = tpu.matmul %20, %21, %cst_18 {dimension_numbers = #tpu.dot_dimension_numbers<[1], [0], [0], [1], [0, 0, 1, 1], [], []>} : vector<128x128xbf16>, vector<128x128xbf16>, vector<128x128xf32> -> vector<128x128xf32>
      %c0_19 = arith.constant 0 : index
      %c0_20 = arith.constant 0 : index
      %23 = vector.load %arg7[%c0_19, %c0_20] : memref<1x128xf32, #tpu.memory_space<vmem>>, vector<1x128xf32>
      %24 = vector.broadcast %23 : vector<1x128xf32> to vector<128x128xf32>
      %25 = arith.addf %22, %24 : vector<128x128xf32>
      %c0_21 = arith.constant 0 : index
      %c0_22 = arith.constant 0 : index
      %26 = vector.load %arg8[%c0_21, %c0_22] : memref<128x128xf32, #tpu.memory_space<vmem>>, vector<128x128xf32>
      tpu.vector_store %arg8[%c0_21, %c0_22], %25 {strides = array<i32>} : memref<128x128xf32, #tpu.memory_space<vmem>>, vector<128x128xf32>,
    } else {
    }
    return
  }
  func.func @transform_0(%arg0: i32, %arg1: i32) -> (i32, i32) {
    %c0_i32 = arith.constant 0 : i32
    %c0_i32_0 = arith.constant 0 : i32
    return %arg1, %c0_i32 : i32, i32
  }
  func.func @transform_1(%arg0: i32, %arg1: i32) -> (i32, i32) {
    %c0_i32 = arith.constant 0 : i32
    %c0_i32_0 = arith.constant 0 : i32
    return %arg0, %c0_i32 : i32, i32
  }
  func.func @transform_2(%arg0: i32, %arg1: i32) -> (i32, i32) {
    %c0_i32 = arith.constant 0 : i32
    return %arg0, %arg1 : i32, i32
  }
  func.func @transform_3(%arg0: i32, %arg1: i32) -> (i32, i32) {
    %c0_i32 = arith.constant 0 : i32
    return %arg0, %arg1 : i32, i32
  }
  func.func @transform_4(%arg0: i32, %arg1: i32) -> (i32, i32) {
    %c0_i32 = arith.constant 0 : i32
    %c0_i32_0 = arith.constant 0 : i32
    %c0_i32_1 = arith.constant 0 : i32
    return %c0_i32, %c0_i32_0 : i32, i32
  }
  func.func @transform_5(%arg0: i32, %arg1: i32) -> (i32, i32) {
    %c0_i32 = arith.constant 0 : i32
    %c0_i32_0 = arith.constant 0 : i32
    %c0_i32_1 = arith.constant 0 : i32
    return %c0_i32, %c0_i32_0 : i32, i32
  }
  func.func @transform_6(%arg0: i32, %arg1: i32) -> (i32, i32) {
    %c0_i32 = arith.constant 0 : i32
    %c0_i32_0 = arith.constant 0 : i32
    return %arg0, %c0_i32 : i32, i32
  }
}

module attributes {stable_mosaic.version = 11 : i64} {
  func.func @_agg_project_kernel(%arg0: i32, %arg1: i32, %arg2: memref<128x256xbf16, #tpu.memory_space<vmem>>, %arg3: memref<128x128xf32, #tpu.memory_space<vmem>>, %arg4: memref<128x128xbf16, #tpu.memory_space<vmem>>, %arg5: memref<128x128xbf16, #tpu.memory_space<vmem>>, %arg6: memref<128x384xbf16, #tpu.memory_space<vmem>>, %arg7: memref<1x128xf32, #tpu.memory_space<vmem>>, %arg8: memref<128x256xbf16, #tpu.memory_space<vmem>>, %arg9: memref<128x128xf32, #tpu.memory_space<vmem>>, %arg10: memref<128x128xf32, #tpu.memory_space<vmem>>) attributes {dimension_semantics = [#tpu.dimension_semantics<parallel>, #tpu.dimension_semantics<arbitrary>], iteration_bounds = array<i64: 1, 1>, scalar_prefetch = 0 : i64, scratch_operands = 1 : i64, tpu.core_type = #tpu.core_type<tc>, window_params = [{transform_indices = @transform_0, window_bounds = array<i64: 128, 256>}, {transform_indices = @transform_1, window_bounds = array<i64: 128, 128>}, {transform_indices = @transform_2, window_bounds = array<i64: 128, 128>}, {transform_indices = @transform_3, window_bounds = array<i64: 128, 128>}, {pipeline_mode = #tpu.pipeline_mode<synchronous>, transform_indices = @transform_4, window_bounds = array<i64: 128, 384>}, {pipeline_mode = #tpu.pipeline_mode<synchronous>, transform_indices = @transform_5, window_bounds = array<i64: 1, 128>}, {transform_indices = @transform_6, window_bounds = array<i64: 128, 256>}, {transform_indices = @transform_7, window_bounds = array<i64: 128, 128>}]} {
    %c0_i32 = arith.constant 0 : i32
    %0 = arith.cmpi eq, %arg1, %c0_i32 : i32
    %1 = arith.extui %0 : i1 to i32
    %c0_i32_0 = arith.constant 0 : i32
    %2 = arith.cmpi ne, %1, %c0_i32_0 : i32
    scf.if %2 {
      %c0_13 = arith.constant 0 : index
      %c0_14 = arith.constant 0 : index
      %17 = vector.load %arg3[%c0_13, %c0_14] : memref<128x128xf32, #tpu.memory_space<vmem>>, vector<128x128xf32>
      %c0_15 = arith.constant 0 : index
      %c0_16 = arith.constant 0 : index
      %18 = vector.load %arg10[%c0_15, %c0_16] : memref<128x128xf32, #tpu.memory_space<vmem>>, vector<128x128xf32>
      tpu.vector_store %arg10[%c0_15, %c0_16], %17 {strides = array<i32>} : memref<128x128xf32, #tpu.memory_space<vmem>>, vector<128x128xf32>,
    } else {
    }
    %c0 = arith.constant 0 : index
    %c0_1 = arith.constant 0 : index
    %3 = vector.load %arg2[%c0, %c0_1] : memref<128x256xbf16, #tpu.memory_space<vmem>>, vector<128x256xbf16>
    %c0_2 = arith.constant 0 : index
    %c0_3 = arith.constant 0 : index
    %4 = vector.load %arg10[%c0_2, %c0_3] : memref<128x128xf32, #tpu.memory_space<vmem>>, vector<128x128xf32>
    %c0_4 = arith.constant 0 : index
    %c0_5 = arith.constant 0 : index
    %5 = vector.load %arg4[%c0_4, %c0_5] : memref<128x128xbf16, #tpu.memory_space<vmem>>, vector<128x128xbf16>
    %6 = vector.extract_strided_slice %3 {offsets = [0, 0], sizes = [128, 128], strides = [1, 1]} : vector<128x256xbf16> to vector<128x128xbf16>
    %cst = arith.constant dense<0.000000e+00> : vector<128x128xf32>
    %7 = tpu.matmul %5, %6, %cst {dimension_numbers = #tpu.dot_dimension_numbers<[1], [0], [0], [1], [0, 0, 1, 1], [], []>} : vector<128x128xbf16>, vector<128x128xbf16>, vector<128x128xf32> -> vector<128x128xf32>
    %c0_6 = arith.constant 0 : index
    %c0_7 = arith.constant 0 : index
    %8 = vector.load %arg5[%c0_6, %c0_7] : memref<128x128xbf16, #tpu.memory_space<vmem>>, vector<128x128xbf16>
    %9 = vector.extract_strided_slice %3 {offsets = [0, 128], sizes = [128, 128], strides = [1, 1]} : vector<128x256xbf16> to vector<128x128xbf16>
    %cst_8 = arith.constant dense<0.000000e+00> : vector<128x128xf32>
    %10 = tpu.matmul %8, %9, %cst_8 {dimension_numbers = #tpu.dot_dimension_numbers<[1], [0], [0], [1], [0, 0, 1, 1], [], []>} : vector<128x128xbf16>, vector<128x128xbf16>, vector<128x128xf32> -> vector<128x128xf32>
    %11 = arith.addf %7, %10 : vector<128x128xf32>
    %12 = arith.addf %4, %11 : vector<128x128xf32>
    %c0_9 = arith.constant 0 : index
    %c0_10 = arith.constant 0 : index
    %13 = vector.load %arg10[%c0_9, %c0_10] : memref<128x128xf32, #tpu.memory_space<vmem>>, vector<128x128xf32>
    tpu.vector_store %arg10[%c0_9, %c0_10], %12 {strides = array<i32>} : memref<128x128xf32, #tpu.memory_space<vmem>>, vector<128x128xf32>,
    %c0_i32_11 = arith.constant 0 : i32
    %14 = arith.cmpi eq, %arg1, %c0_i32_11 : i32
    %15 = arith.extui %14 : i1 to i32
    %c0_i32_12 = arith.constant 0 : i32
    %16 = arith.cmpi ne, %15, %c0_i32_12 : i32
    scf.if %16 {
      %c0_13 = arith.constant 0 : index
      %c0_14 = arith.constant 0 : index
      %17 = vector.load %arg10[%c0_13, %c0_14] : memref<128x128xf32, #tpu.memory_space<vmem>>, vector<128x128xf32>
      %cst_15 = arith.constant 0.000000e+00 : f32
      %18 = vector.broadcast %cst_15 : f32 to vector<128x128xf32>
      %19 = arith.maximumf %17, %18 : vector<128x128xf32>
      %20 = arith.truncf %19 : vector<128x128xf32> to vector<128x128xbf16>
      %c0_16 = arith.constant 0 : index
      %c0_17 = arith.constant 0 : index
      %21 = vector.load %arg6[%c0_16, %c0_17] : memref<128x384xbf16, #tpu.memory_space<vmem>>, vector<128x384xbf16>
      %cst_18 = arith.constant dense<0.000000e+00> : vector<128x384xf32>
      %22 = tpu.matmul %20, %21, %cst_18 {dimension_numbers = #tpu.dot_dimension_numbers<[1], [0], [0], [1], [0, 0, 1, 1], [], []>} : vector<128x128xbf16>, vector<128x384xbf16>, vector<128x384xf32> -> vector<128x384xf32>
      %23 = vector.extract_strided_slice %22 {offsets = [0, 0], sizes = [128, 256], strides = [1, 1]} : vector<128x384xf32> to vector<128x256xf32>
      %24 = arith.truncf %23 : vector<128x256xf32> to vector<128x256xbf16>
      %c0_19 = arith.constant 0 : index
      %c0_20 = arith.constant 0 : index
      %25 = vector.load %arg8[%c0_19, %c0_20] : memref<128x256xbf16, #tpu.memory_space<vmem>>, vector<128x256xbf16>
      tpu.vector_store %arg8[%c0_19, %c0_20], %24 {strides = array<i32>} : memref<128x256xbf16, #tpu.memory_space<vmem>>, vector<128x256xbf16>,
      %26 = vector.extract_strided_slice %22 {offsets = [0, 256], sizes = [128, 128], strides = [1, 1]} : vector<128x384xf32> to vector<128x128xf32>
      %c0_21 = arith.constant 0 : index
      %c0_22 = arith.constant 0 : index
      %27 = vector.load %arg7[%c0_21, %c0_22] : memref<1x128xf32, #tpu.memory_space<vmem>>, vector<1x128xf32>
      %28 = vector.broadcast %27 : vector<1x128xf32> to vector<128x128xf32>
      %29 = arith.addf %26, %28 : vector<128x128xf32>
      %c0_23 = arith.constant 0 : index
      %c0_24 = arith.constant 0 : index
      %30 = vector.load %arg9[%c0_23, %c0_24] : memref<128x128xf32, #tpu.memory_space<vmem>>, vector<128x128xf32>
      tpu.vector_store %arg9[%c0_23, %c0_24], %29 {strides = array<i32>} : memref<128x128xf32, #tpu.memory_space<vmem>>, vector<128x128xf32>,
    } else {
    }
    return
  }
  func.func @transform_0(%arg0: i32, %arg1: i32) -> (i32, i32) {
    %c0_i32 = arith.constant 0 : i32
    %c0_i32_0 = arith.constant 0 : i32
    return %arg1, %c0_i32 : i32, i32
  }
  func.func @transform_1(%arg0: i32, %arg1: i32) -> (i32, i32) {
    %c0_i32 = arith.constant 0 : i32
    %c0_i32_0 = arith.constant 0 : i32
    return %arg0, %c0_i32 : i32, i32
  }
  func.func @transform_2(%arg0: i32, %arg1: i32) -> (i32, i32) {
    %c0_i32 = arith.constant 0 : i32
    return %arg0, %arg1 : i32, i32
  }
  func.func @transform_3(%arg0: i32, %arg1: i32) -> (i32, i32) {
    %c0_i32 = arith.constant 0 : i32
    return %arg0, %arg1 : i32, i32
  }
  func.func @transform_4(%arg0: i32, %arg1: i32) -> (i32, i32) {
    %c0_i32 = arith.constant 0 : i32
    %c0_i32_0 = arith.constant 0 : i32
    %c0_i32_1 = arith.constant 0 : i32
    return %c0_i32, %c0_i32_0 : i32, i32
  }
  func.func @transform_5(%arg0: i32, %arg1: i32) -> (i32, i32) {
    %c0_i32 = arith.constant 0 : i32
    %c0_i32_0 = arith.constant 0 : i32
    %c0_i32_1 = arith.constant 0 : i32
    return %c0_i32, %c0_i32_0 : i32, i32
  }
  func.func @transform_6(%arg0: i32, %arg1: i32) -> (i32, i32) {
    %c0_i32 = arith.constant 0 : i32
    %c0_i32_0 = arith.constant 0 : i32
    return %arg0, %c0_i32 : i32, i32
  }
  func.func @transform_7(%arg0: i32, %arg1: i32) -> (i32, i32) {
    %c0_i32 = arith.constant 0 : i32
    %c0_i32_0 = arith.constant 0 : i32
    return %arg0, %c0_i32 : i32, i32
  }
}

</mosaic_0001>

<llo_original>
// kernel: mul.3
$region0: #{mul.3}
  #allocation0 [shape = 's32[1]{0}', space=sflag, size = 0x4, scoped, tag = 'scoped memory for mul.3']
  %s0 = inlined_call_operand.vmem [shape: f32[40], index: 0, kind: input, shape index: {}]
  %s1 = inlined_call_operand.vmem [shape: f32[40], index: 1, kind: input, shape index: {}]
  %s2 = inlined_call_operand.vmem [shape: f32[40], index: 2, kind: output, shape index: {}]
  %v3 = vld [vmem:[%s0] sm:$0x1]
  %v4 = vld [vmem:[%s1] sm:$0x1]
  %5 = xla_tuple %v3, %v4
  %6 = xla_tuple %5
  %v7 = vmul.f32 %v3, %v4
  %8 = xla_tuple %v7
  %9 = vst [vmem:[%s2] sm:$0x1] %v7

// kernel: mini_gnn_forward.5
$region0: #{mini_gnn_forward.5}
  #allocation0 [shape = 'u32[]', space=smem, size = 0x4, offset = 0x4, fixed_abs, tag = 'smem constant byte address 0x4 - core index']
  #allocation1 [shape = 'u32[144,128]{1,0:T(1,128)}', space=vmem, size = 0x12000, scoped, tag = 'internal scratch']
  #allocation2 [shape = 'f32[128,128]{1,0:T(8,128)}', space=vmem, size = 0x10000, scoped, tag = 'scratch operand']
  %s0 = inlined_call_operand.vmem [shape: bf16[128,256], index: 0, kind: input, shape index: {}]
  %s1 = inlined_call_operand.vmem [shape: f32[128,128], index: 1, kind: input, shape index: {}]
  %s2 = inlined_call_operand.vmem [shape: bf16[128,128], index: 2, kind: input, shape index: {}]
  %s3 = inlined_call_operand.vmem [shape: bf16[128,128], index: 3, kind: input, shape index: {}]
  %s4 = inlined_call_operand.vmem [shape: bf16[128,128], index: 4, kind: input, shape index: {}]
  %s5 = inlined_call_operand.vmem [shape: f32[1,128], index: 5, kind: input, shape index: {}]
  %s6 = inlined_call_operand.vmem [shape: f32[128,128], index: 6, kind: output, shape index: {}]
  %s7 = sld [smem:[#allocation0]]
  $region42: #{mini_gnn_forward.5} parent=0
    _
  %s9 = ssub.s32 1, %s7
  %s10 = scalar_select 0, %s9, %s7
  // Predicated region
  $region2: #{mini_gnn_forward.5} parent=0 // pred_check
    _
  $region3: #{mini_gnn_forward.5} parent=0 // pred_check_branch
    %12 = sbr.rel (0) target = $region5
  $region4: #{mini_gnn_forward.5} parent=0 // pred_region
    _
  $region5: #{mini_gnn_forward.5} parent=0 // pred_fallthru
    _
  // Predicated region
  $region6: #{mini_gnn_forward.5} parent=0 // pred_check
    _
  $region7: #{mini_gnn_forward.5} parent=0 // pred_check_branch
    %14 = sbr.rel (0) target = $region9
  $region8: #{mini_gnn_forward.5} parent=0 // pred_region
    _
  $region9: #{mini_gnn_forward.5} parent=0 // pred_fallthru
    _
  // Predicated region
  $region10: #{mini_gnn_forward.5} parent=0 // pred_check
    _
  $region11: #{mini_gnn_forward.5} parent=0 // pred_check_branch
    %16 = sbr.rel (0) target = $region13
  $region12: #{mini_gnn_forward.5} parent=0 // pred_region
    _
  $region13: #{mini_gnn_forward.5} parent=0 // pred_fallthru
    _
  // Predicated region
  $region14: #{mini_gnn_forward.5} parent=0 // pred_check
    _
  $region15: #{mini_gnn_forward.5} parent=0 // pred_check_branch
    %18 = sbr.rel (0) target = $region17
  $region16: #{mini_gnn_forward.5} parent=0 // pred_region
    _
  $region17: #{mini_gnn_forward.5} parent=0 // pred_fallthru
    _
  // Predicated region
  $region18: #{mini_gnn_forward.5} parent=0 // pred_check
    _
  $region19: #{mini_gnn_forward.5} parent=0 // pred_check_branch
    %20 = sbr.rel (0) target = $region21
  $region20: #{mini_gnn_forward.5} parent=0 // pred_region
    _
  $region21: #{mini_gnn_forward.5} parent=0 // pred_fallthru
    _
  // Predicated region
  $region22: #{mini_gnn_forward.5} parent=0 // pred_check
    _
  $region23: #{mini_gnn_forward.5} parent=0 // pred_check_branch
    %22 = sbr.rel (0) target = $region25
  $region24: #{mini_gnn_forward.5} parent=0 // pred_region
    _
  $region25: #{mini_gnn_forward.5} parent=0 // pred_fallthru
    _
  %p24 = scmp.eq.s32.totalorder 0, 0
  // Predicated region
  $region26: #{mini_gnn_forward.5} parent=0 // pred_check
    %p25 = pneg %p24
  $region27: #{mini_gnn_forward.5} parent=0 // pred_check_branch
    %27 = sbr.rel (%p25) target = $region29
  $region28: #{mini_gnn_forward.5} parent=0 // pred_region
    %v28 = vld [vmem:[%s1] sm:$0xff]
    %v29 = vld [vmem:[%s1 + $0x8] sm:$0xff]
    %v30 = vld [vmem:[%s1 + $0x10] sm:$0xff]
    %v31 = vld [vmem:[%s1 + $0x18] sm:$0xff]
    %v32 = vld [vmem:[%s1 + $0x20] sm:$0xff]
    %v33 = vld [vmem:[%s1 + $0x28] sm:$0xff]
    %v34 = vld [vmem:[%s1 + $0x30] sm:$0xff]
    %v35 = vld [vmem:[%s1 + $0x38] sm:$0xff]
    %v36 = vld [vmem:[%s1 + $0x40] sm:$0xff]
    %v37 = vld [vmem:[%s1 + $0x48] sm:$0xff]
    %v38 = vld [vmem:[%s1 + $0x50] sm:$0xff]
    %v39 = vld [vmem:[%s1 + $0x58] sm:$0xff]
    %v40 = vld [vmem:[%s1 + $0x60] sm:$0xff]
    %v41 = vld [vmem:[%s1 + $0x68] sm:$0xff]
    %v42 = vld [vmem:[%s1 + $0x70] sm:$0xff]
    %v43 = vld [vmem:[%s1 + $0x78] sm:$0xff]
    %44 = vst [vmem:[#allocation2] sm:$0xff] %v28
    %45 = vst [vmem:[#allocation2 + $0x8] sm:$0xff] %v29
    %46 = vst [vmem:[#allocation2 + $0x10] sm:$0xff] %v30
    %47 = vst [vmem:[#allocation2 + $0x18] sm:$0xff] %v31
    %48 = vst [vmem:[#allocation2 + $0x20] sm:$0xff] %v32
    %49 = vst [vmem:[#allocation2 + $0x28] sm:$0xff] %v33
    %50 = vst [vmem:[#allocation2 + $0x30] sm:$0xff] %v34
    %51 = vst [vmem:[#allocation2 + $0x38] sm:$0xff] %v35
    %52 = vst [vmem:[#allocation2 + $0x40] sm:$0xff] %v36
    %53 = vst [vmem:[#allocation2 + $0x48] sm:$0xff] %v37
    %54 = vst [vmem:[#allocation2 + $0x50] sm:$0xff] %v38
    %55 = vst [vmem:[#allocation2 + $0x58] sm:$0xff] %v39
    %56 = vst [vmem:[#allocation2 + $0x60] sm:$0xff] %v40
    %57 = vst [vmem:[#allocation2 + $0x68] sm:$0xff] %v41
    %58 = vst [vmem:[#allocation2 + $0x70] sm:$0xff] %v42
    %59 = vst [vmem:[#allocation2 + $0x78] sm:$0xff] %v43
  $region29: #{mini_gnn_forward.5} parent=0 // pred_fallthru
    _
  %v60 = vld [vmem:[%s0] sm:$0xff]
  %v61 = vld [vmem:[%s0 + $0x8] sm:$0xff]
  %v62 = vld [vmem:[%s0 + $0x10] sm:$0xff]
  %v63 = vld [vmem:[%s0 + $0x18] sm:$0xff]
  %v64 = vld [vmem:[%s0 + $0x20] sm:$0xff]
  %v65 = vld [vmem:[%s0 + $0x28] sm:$0xff]
  %v66 = vld [vmem:[%s0 + $0x30] sm:$0xff]
  %v67 = vld [vmem:[%s0 + $0x38] sm:$0xff]
  %v68 = vld [vmem:[%s0 + $0x40] sm:$0xff]
  %v69 = vld [vmem:[%s0 + $0x48] sm:$0xff]
  %v70 = vld [vmem:[%s0 + $0x50] sm:$0xff]
  %v71 = vld [vmem:[%s0 + $0x58] sm:$0xff]
  %v72 = vld [vmem:[%s0 + $0x60] sm:$0xff]
  %v73 = vld [vmem:[%s0 + $0x68] sm:$0xff]
  %v74 = vld [vmem:[%s0 + $0x70] sm:$0xff]
  %v75 = vld [vmem:[%s0 + $0x78] sm:$0xff]
  %v76 = vld [vmem:[#allocation2] sm:$0xff]
  %v77 = vld [vmem:[#allocation2 + $0x8] sm:$0xff]
  %v78 = vld [vmem:[#allocation2 + $0x10] sm:$0xff]
  %v79 = vld [vmem:[#allocation2 + $0x18] sm:$0xff]
  %v80 = vld [vmem:[#allocation2 + $0x20] sm:$0xff]
  %v81 = vld [vmem:[#allocation2 + $0x28] sm:$0xff]
  %v82 = vld [vmem:[#allocation2 + $0x30] sm:$0xff]
  %v83 = vld [vmem:[#allocation2 + $0x38] sm:$0xff]
  %v84 = vld [vmem:[#allocation2 + $0x40] sm:$0xff]
  %v85 = vld [vmem:[#allocation2 + $0x48] sm:$0xff]
  %v86 = vld [vmem:[#allocation2 + $0x50] sm:$0xff]
  %v87 = vld [vmem:[#allocation2 + $0x58] sm:$0xff]
  %v88 = vld [vmem:[#allocation2 + $0x60] sm:$0xff]
  %v89 = vld [vmem:[#allocation2 + $0x68] sm:$0xff]
  %v90 = vld [vmem:[#allocation2 + $0x70] sm:$0xff]
  %v91 = vld [vmem:[#allocation2 + $0x78] sm:$0xff]
  %v92 = vld [vmem:[%s2] sm:$0xf]
  %v93 = vld [vmem:[%s2 + $0x4] sm:$0xf]
  %v94 = vld [vmem:[%s2 + $0x8] sm:$0xf]
  %v95 = vld [vmem:[%s2 + $0xc] sm:$0xf]
  %v96 = vld [vmem:[%s2 + $0x10] sm:$0xf]
  %v97 = vld [vmem:[%s2 + $0x14] sm:$0xf]
  %v98 = vld [vmem:[%s2 + $0x18] sm:$0xf]
  %v99 = vld [vmem:[%s2 + $0x1c] sm:$0xf]
  %v100 = vld [vmem:[%s2 + $0x20] sm:$0xf]
  %v101 = vld [vmem:[%s2 + $0x24] sm:$0xf]
  %v102 = vld [vmem:[%s2 + $0x28] sm:$0xf]
  %v103 = vld [vmem:[%s2 + $0x2c] sm:$0xf]
  %v104 = vld [vmem:[%s2 + $0x30] sm:$0xf]
  %v105 = vld [vmem:[%s2 + $0x34] sm:$0xf]
  %v106 = vld [vmem:[%s2 + $0x38] sm:$0xf]
  %v107 = vld [vmem:[%s2 + $0x3c] sm:$0xf]
  %v108 = vld [vmem:[%s3] sm:$0xf]
  %v109 = vld [vmem:[%s3 + $0x4] sm:$0xf]
  %v110 = vld [vmem:[%s3 + $0x8] sm:$0xf]
  %v111 = vld [vmem:[%s3 + $0xc] sm:$0xf]
  %v112 = vld [vmem:[%s3 + $0x10] sm:$0xf]
  %v113 = vld [vmem:[%s3 + $0x14] sm:$0xf]
  %v114 = vld [vmem:[%s3 + $0x18] sm:$0xf]
  %v115 = vld [vmem:[%s3 + $0x1c] sm:$0xf]
  %v116 = vld [vmem:[%s3 + $0x20] sm:$0xf]
  %v117 = vld [vmem:[%s3 + $0x24] sm:$0xf]
  %v118 = vld [vmem:[%s3 + $0x28] sm:$0xf]
  %v119 = vld [vmem:[%s3 + $0x2c] sm:$0xf]
  %v120 = vld [vmem:[%s3 + $0x30] sm:$0xf]
  %v121 = vld [vmem:[%s3 + $0x34] sm:$0xf]
  %v122 = vld [vmem:[%s3 + $0x38] sm:$0xf]
  %v123 = vld [vmem:[%s3 + $0x3c] sm:$0xf]
  %v140 = vunpack.c.l.b16 %v108
  %v141 = vunpack.c.l.b16 %v109
  %v142 = vunpack.c.l.b16 %v110
  %v143 = vunpack.c.l.b16 %v111
  %v144 = vunpack.c.l.b16 %v112
  %v145 = vunpack.c.l.b16 %v113
  %v146 = vunpack.c.l.b16 %v114
  %v147 = vunpack.c.l.b16 %v115
  %v148 = vunpack.c.l.b16 %v116
  %v149 = vunpack.c.l.b16 %v117
  %v150 = vunpack.c.l.b16 %v118
  %v151 = vunpack.c.l.b16 %v119
  %v152 = vunpack.c.l.b16 %v120
  %v153 = vunpack.c.l.b16 %v121
  %v154 = vunpack.c.l.b16 %v122
  %v155 = vunpack.c.l.b16 %v123
  %v156 = vpack.c.b16 %v141, %v140
  %v157 = vpack.c.b16 %v143, %v142
  %v158 = vpack.c.b16 %v145, %v144
  %v159 = vpack.c.b16 %v147, %v146
  %v160 = vpack.c.b16 %v149, %v148
  %v161 = vpack.c.b16 %v151, %v150
  %v162 = vpack.c.b16 %v153, %v152
  %v163 = vpack.c.b16 %v155, %v154
  %v188 = vunpack.c.h.b16 %v60
  %v189 = vunpack.c.h.b16 %v61
  %v190 = vunpack.c.h.b16 %v62
  %v191 = vunpack.c.h.b16 %v63
  %v192 = vunpack.c.h.b16 %v64
  %v193 = vunpack.c.h.b16 %v65
  %v194 = vunpack.c.h.b16 %v66
  %v195 = vunpack.c.h.b16 %v67
  %v196 = vunpack.c.h.b16 %v68
  %v197 = vunpack.c.h.b16 %v69
  %v198 = vunpack.c.h.b16 %v70
  %v199 = vunpack.c.h.b16 %v71
  %v200 = vunpack.c.h.b16 %v72
  %v201 = vunpack.c.h.b16 %v73
  %v202 = vunpack.c.h.b16 %v74
  %v203 = vunpack.c.h.b16 %v75
  %v204 = vpack.c.b16 %v189, %v188
  %v205 = vpack.c.b16 %v191, %v190
  %v206 = vpack.c.b16 %v193, %v192
  %v207 = vpack.c.b16 %v195, %v194
  %v208 = vpack.c.b16 %v197, %v196
  %v209 = vpack.c.b16 %v199, %v198
  %v210 = vpack.c.b16 %v201, %v200
  %v211 = vpack.c.b16 %v203, %v202
  %220 = vmatprep.subr.bf16.mxu0 0
  %221 = vmatpush1.bf16.msra.mxu0 %v211
  %222 = vmatprep.subr.bf16.mxu0 0
  %223 = vmatpush1.bf16.msra.mxu0 %v210
  %224 = vmatprep.subr.bf16.mxu0 0
  %225 = vmatpush1.bf16.msra.mxu0 %v209
  %226 = vmatprep.subr.bf16.mxu0 0
  %227 = vmatpush1.bf16.msra.mxu0 %v208
  %228 = vmatprep.subr.bf16.mxu0 0
  %229 = vmatpush1.bf16.msra.mxu0 %v207
  %230 = vmatprep.subr.bf16.mxu0 0
  %231 = vmatpush1.bf16.msra.mxu0 %v206
  %232 = vmatprep.subr.bf16.mxu0 0
  %233 = vmatpush1.bf16.msra.mxu0 %v205
  %234 = vmatprep.subr.bf16.mxu0 0
  %235 = vmatpush1.bf16.msra.mxu0 %v204
  %236 = vmatprep.subr.bf16.mxu0 0
  %237 = vmatpush2.bf16.msra.mxu0 0
  %238 = vmatprep.subr.bf16.mxu0 0
  %239 = vmatpush2.bf16.msra.mxu0 0
  %240 = vmatprep.subr.bf16.mxu0 0
  %241 = vmatpush2.bf16.msra.mxu0 0
  %242 = vmatprep.subr.bf16.mxu0 0
  %243 = vmatpush2.bf16.msra.mxu0 0
  %244 = vmatprep.subr.bf16.mxu0 0
  %245 = vmatpush2.bf16.msra.mxu0 0
  %246 = vmatprep.subr.bf16.mxu0 0
  %247 = vmatpush2.bf16.msra.mxu0 0
  %248 = vmatprep.subr.bf16.mxu0 0
  %249 = vmatpush2.bf16.msra.mxu0 0
  %250 = vmatprep.subr.bf16.mxu0 0
  %251 = vmatpush2.bf16.msra.mxu0 0
  %252 = vmatprep.mubr.bf16.mxu0 0
  %253 = vmatmul.mubr.bf16.gmra.mxu0 %v156
  %v254 = vpop.f32.mrf.mxu0
  %v255 = vadd.f32 0.0, %v254
  %v256 = vpop.f32.mrf.mxu0
  %v257 = vpop.f32.mrf.mxu0
  %v258 = vadd.f32 0.0, %v257
  %v259 = vpop.f32.mrf.mxu0
  %260 = vmatprep.mubr.bf16.mxu0 0
  %261 = vmatmul.mubr.bf16.gmra.mxu0 %v157
  %v262 = vpop.f32.mrf.mxu0
  %v263 = vadd.f32 0.0, %v262
  %v264 = vpop.f32.mrf.mxu0
  %v265 = vpop.f32.mrf.mxu0
  %v266 = vadd.f32 0.0, %v265
  %v267 = vpop.f32.mrf.mxu0
  %268 = vmatprep.mubr.bf16.mxu0 0
  %269 = vmatmul.mubr.bf16.gmra.mxu0 %v158
  %v270 = vpop.f32.mrf.mxu0
  %v271 = vadd.f32 0.0, %v270
  %v272 = vpop.f32.mrf.mxu0
  %v273 = vpop.f32.mrf.mxu0
  %v274 = vadd.f32 0.0, %v273
  %v275 = vpop.f32.mrf.mxu0
  %276 = vmatprep.mubr.bf16.mxu0 0
  %277 = vmatmul.mubr.bf16.gmra.mxu0 %v159
  %v278 = vpop.f32.mrf.mxu0
  %v279 = vadd.f32 0.0, %v278
  %v280 = vpop.f32.mrf.mxu0
  %v281 = vpop.f32.mrf.mxu0
  %v282 = vadd.f32 0.0, %v281
  %v283 = vpop.f32.mrf.mxu0
  %284 = vmatprep.mubr.bf16.mxu0 0
  %285 = vmatmul.mubr.bf16.gmra.mxu0 %v160
  %v286 = vpop.f32.mrf.mxu0
  %v287 = vadd.f32 0.0, %v286
  %v288 = vpop.f32.mrf.mxu0
  %v289 = vpop.f32.mrf.mxu0
  %v290 = vadd.f32 0.0, %v289
  %v291 = vpop.f32.mrf.mxu0
  %292 = vmatprep.mubr.bf16.mxu0 0
  %293 = vmatmul.mubr.bf16.gmra.mxu0 %v161
  %v294 = vpop.f32.mrf.mxu0
  %v295 = vadd.f32 0.0, %v294
  %v296 = vpop.f32.mrf.mxu0
  %v297 = vpop.f32.mrf.mxu0
  %v298 = vadd.f32 0.0, %v297
  %v299 = vpop.f32.mrf.mxu0
  %300 = vmatprep.mubr.bf16.mxu0 0
  %301 = vmatmul.mubr.bf16.gmra.mxu0 %v162
  %v302 = vpop.f32.mrf.mxu0
  %v303 = vadd.f32 0.0, %v302
  %v304 = vpop.f32.mrf.mxu0
  %v305 = vpop.f32.mrf.mxu0
  %v306 = vadd.f32 0.0, %v305
  %v307 = vpop.f32.mrf.mxu0
  %308 = vmatprep.mubr.bf16.mxu0 0
  %309 = vmatmul.mubr.bf16.gmra.mxu0 %v163
  %v310 = vpop.f32.mrf.mxu0
  %v311 = vadd.f32 0.0, %v310
  %v312 = vpop.f32.mrf.mxu0
  %v313 = vpop.f32.mrf.mxu0
  %v314 = vadd.f32 0.0, %v313
  %v315 = vpop.f32.mrf.mxu0
  %316 = vdwg.mxu0
  %v333 = vunpack.c.l.b16 %v92
  %v334 = vunpack.c.l.b16 %v93
  %v335 = vunpack.c.l.b16 %v94
  %v336 = vunpack.c.l.b16 %v95
  %v337 = vunpack.c.l.b16 %v96
  %v338 = vunpack.c.l.b16 %v97
  %v339 = vunpack.c.l.b16 %v98
  %v340 = vunpack.c.l.b16 %v99
  %v341 = vunpack.c.l.b16 %v100
  %v342 = vunpack.c.l.b16 %v101
  %v343 = vunpack.c.l.b16 %v102
  %v344 = vunpack.c.l.b16 %v103
  %v345 = vunpack.c.l.b16 %v104
  %v346 = vunpack.c.l.b16 %v105
  %v347 = vunpack.c.l.b16 %v106
  %v348 = vunpack.c.l.b16 %v107
  %v349 = vpack.c.b16 %v334, %v333
  %v350 = vpack.c.b16 %v336, %v335
  %v351 = vpack.c.b16 %v338, %v337
  %v352 = vpack.c.b16 %v340, %v339
  %v353 = vpack.c.b16 %v342, %v341
  %v354 = vpack.c.b16 %v344, %v343
  %v355 = vpack.c.b16 %v346, %v345
  %v356 = vpack.c.b16 %v348, %v347
  %v365 = vunpack.c.l.b16 %v60
  %v366 = vunpack.c.l.b16 %v61
  %v367 = vunpack.c.l.b16 %v62
  %v368 = vunpack.c.l.b16 %v63
  %v369 = vunpack.c.l.b16 %v64
  %v370 = vunpack.c.l.b16 %v65
  %v371 = vunpack.c.l.b16 %v66
  %v372 = vunpack.c.l.b16 %v67
  %v373 = vunpack.c.l.b16 %v68
  %v374 = vunpack.c.l.b16 %v69
  %v375 = vunpack.c.l.b16 %v70
  %v376 = vunpack.c.l.b16 %v71
  %v377 = vunpack.c.l.b16 %v72
  %v378 = vunpack.c.l.b16 %v73
  %v379 = vunpack.c.l.b16 %v74
  %v380 = vunpack.c.l.b16 %v75
  %v381 = vpack.c.b16 %v366, %v365
  %v382 = vpack.c.b16 %v368, %v367
  %v383 = vpack.c.b16 %v370, %v369
  %v384 = vpack.c.b16 %v372, %v371
  %v385 = vpack.c.b16 %v374, %v373
  %v386 = vpack.c.b16 %v376, %v375
  %v387 = vpack.c.b16 %v378, %v377
  %v388 = vpack.c.b16 %v380, %v379
  %397 = vmatprep.subr.bf16.mxu0 0
  %398 = vmatpush1.bf16.msra.mxu0 %v388
  %399 = vmatprep.subr.bf16.mxu0 0
  %400 = vmatpush1.bf16.msra.mxu0 %v387
  %401 = vmatprep.subr.bf16.mxu0 0
  %402 = vmatpush1.bf16.msra.mxu0 %v386
  %403 = vmatprep.subr.bf16.mxu0 0
  %404 = vmatpush1.bf16.msra.mxu0 %v385
  %405 = vmatprep.subr.bf16.mxu0 0
  %406 = vmatpush1.bf16.msra.mxu0 %v384
  %407 = vmatprep.subr.bf16.mxu0 0
  %408 = vmatpush1.bf16.msra.mxu0 %v383
  %409 = vmatprep.subr.bf16.mxu0 0
  %410 = vmatpush1.bf16.msra.mxu0 %v382
  %411 = vmatprep.subr.bf16.mxu0 0
  %412 = vmatpush1.bf16.msra.mxu0 %v381
  %413 = vmatprep.subr.bf16.mxu0 0
  %414 = vmatpush2.bf16.msra.mxu0 0
  %415 = vmatprep.subr.bf16.mxu0 0
  %416 = vmatpush2.bf16.msra.mxu0 0
  %417 = vmatprep.subr.bf16.mxu0 0
  %418 = vmatpush2.bf16.msra.mxu0 0
  %419 = vmatprep.subr.bf16.mxu0 0
  %420 = vmatpush2.bf16.msra.mxu0 0
  %421 = vmatprep.subr.bf16.mxu0 0
  %422 = vmatpush2.bf16.msra.mxu0 0
  %423 = vmatprep.subr.bf16.mxu0 0
  %424 = vmatpush2.bf16.msra.mxu0 0
  %425 = vmatprep.subr.bf16.mxu0 0
  %426 = vmatpush2.bf16.msra.mxu0 0
  %427 = vmatprep.subr.bf16.mxu0 0
  %428 = vmatpush2.bf16.msra.mxu0 0
  %429 = vmatprep.mubr.bf16.mxu0 0
  %430 = vmatmul.mubr.bf16.gmra.mxu0 %v349
  %v431 = vpop.f32.mrf.mxu0
  %v432 = vadd.f32 %v255, %v431
  %v433 = vpop.f32.mrf.mxu0
  %v434 = vpop.f32.mrf.mxu0
  %v435 = vadd.f32 %v258, %v434
  %v436 = vpop.f32.mrf.mxu0
  %437 = vmatprep.mubr.bf16.mxu0 0
  %438 = vmatmul.mubr.bf16.gmra.mxu0 %v350
  %v439 = vpop.f32.mrf.mxu0
  %v440 = vadd.f32 %v263, %v439
  %v441 = vpop.f32.mrf.mxu0
  %v442 = vpop.f32.mrf.mxu0
  %v443 = vadd.f32 %v266, %v442
  %v444 = vpop.f32.mrf.mxu0
  %445 = vmatprep.mubr.bf16.mxu0 0
  %446 = vmatmul.mubr.bf16.gmra.mxu0 %v351
  %v447 = vpop.f32.mrf.mxu0
  %v448 = vadd.f32 %v271, %v447
  %v449 = vpop.f32.mrf.mxu0
  %v450 = vpop.f32.mrf.mxu0
  %v451 = vadd.f32 %v274, %v450
  %v452 = vpop.f32.mrf.mxu0
  %453 = vmatprep.mubr.bf16.mxu0 0
  %454 = vmatmul.mubr.bf16.gmra.mxu0 %v352
  %v455 = vpop.f32.mrf.mxu0
  %v456 = vadd.f32 %v279, %v455
  %v457 = vpop.f32.mrf.mxu0
  %v458 = vpop.f32.mrf.mxu0
  %v459 = vadd.f32 %v282, %v458
  %v460 = vpop.f32.mrf.mxu0
  %461 = vmatprep.mubr.bf16.mxu0 0
  %462 = vmatmul.mubr.bf16.gmra.mxu0 %v353
  %v463 = vpop.f32.mrf.mxu0
  %v464 = vadd.f32 %v287, %v463
  %v465 = vpop.f32.mrf.mxu0
  %v466 = vpop.f32.mrf.mxu0
  %v467 = vadd.f32 %v290, %v466
  %v468 = vpop.f32.mrf.mxu0
  %469 = vmatprep.mubr.bf16.mxu0 0
  %470 = vmatmul.mubr.bf16.gmra.mxu0 %v354
  %v471 = vpop.f32.mrf.mxu0
  %v472 = vadd.f32 %v295, %v471
  %v473 = vpop.f32.mrf.mxu0
  %v474 = vpop.f32.mrf.mxu0
  %v475 = vadd.f32 %v298, %v474
  %v476 = vpop.f32.mrf.mxu0
  %477 = vmatprep.mubr.bf16.mxu0 0
  %478 = vmatmul.mubr.bf16.gmra.mxu0 %v355
  %v479 = vpop.f32.mrf.mxu0
  %v480 = vadd.f32 %v303, %v479
  %v481 = vpop.f32.mrf.mxu0
  %v482 = vpop.f32.mrf.mxu0
  %v483 = vadd.f32 %v306, %v482
  %v484 = vpop.f32.mrf.mxu0
  %485 = vmatprep.mubr.bf16.mxu0 0
  %486 = vmatmul.mubr.bf16.gmra.mxu0 %v356
  %v487 = vpop.f32.mrf.mxu0
  %v488 = vadd.f32 %v311, %v487
  %v489 = vpop.f32.mrf.mxu0
  %v490 = vpop.f32.mrf.mxu0
  %v491 = vadd.f32 %v314, %v490
  %v492 = vpop.f32.mrf.mxu0
  %493 = vdwg.mxu0
  %v494 = vadd.f32 %v76, %v432
  %v495 = vadd.f32 %v77, %v435
  %v496 = vadd.f32 %v78, %v440
  %v497 = vadd.f32 %v79, %v443
  %v498 = vadd.f32 %v80, %v448
  %v499 = vadd.f32 %v81, %v451
  %v500 = vadd.f32 %v82, %v456
  %v501 = vadd.f32 %v83, %v459
  %v502 = vadd.f32 %v84, %v464
  %v503 = vadd.f32 %v85, %v467
  %v504 = vadd.f32 %v86, %v472
  %v505 = vadd.f32 %v87, %v475
  %v506 = vadd.f32 %v88, %v480
  %v507 = vadd.f32 %v89, %v483
  %v508 = vadd.f32 %v90, %v488
  %v509 = vadd.f32 %v91, %v491
  %510 = vst [vmem:[#allocation2] sm:$0xff] %v494
  %511 = vst [vmem:[#allocation2 + $0x8] sm:$0xff] %v495
  %512 = vst [vmem:[#allocation2 + $0x10] sm:$0xff] %v496
  %513 = vst [vmem:[#allocation2 + $0x18] sm:$0xff] %v497
  %514 = vst [vmem:[#allocation2 + $0x20] sm:$0xff] %v498
  %515 = vst [vmem:[#allocation2 + $0x28] sm:$0xff] %v499
  %516 = vst [vmem:[#allocation2 + $0x30] sm:$0xff] %v500
  %517 = vst [vmem:[#allocation2 + $0x38] sm:$0xff] %v501
  %518 = vst [vmem:[#allocation2 + $0x40] sm:$0xff] %v502
  %519 = vst [vmem:[#allocation2 + $0x48] sm:$0xff] %v503
  %520 = vst [vmem:[#allocation2 + $0x50] sm:$0xff] %v504
  %521 = vst [vmem:[#allocation2 + $0x58] sm:$0xff] %v505
  %522 = vst [vmem:[#allocation2 + $0x60] sm:$0xff] %v506
  %523 = vst [vmem:[#allocation2 + $0x68] sm:$0xff] %v507
  %524 = vst [vmem:[#allocation2 + $0x70] sm:$0xff] %v508
  %525 = vst [vmem:[#allocation2 + $0x78] sm:$0xff] %v509
  // Predicated region
  $region30: #{mini_gnn_forward.5} parent=0 // pred_check
    %p526 = pneg %p24
  $region31: #{mini_gnn_forward.5} parent=0 // pred_check_branch
    %528 = sbr.rel (%p526) target = $region33
  $region32: #{mini_gnn_forward.5} parent=0 // pred_region
    %v529 = vld [vmem:[#allocation2] sm:$0xff]
    %v530 = vld [vmem:[#allocation2 + $0x8] sm:$0xff]
    %v531 = vld [vmem:[#allocation2 + $0x10] sm:$0xff]
    %v532 = vld [vmem:[#allocation2 + $0x18] sm:$0xff]
    %v533 = vld [vmem:[#allocation2 + $0x20] sm:$0xff]
    %v534 = vld [vmem:[#allocation2 + $0x28] sm:$0xff]
    %v535 = vld [vmem:[#allocation2 + $0x30] sm:$0xff]
    %v536 = vld [vmem:[#allocation2 + $0x38] sm:$0xff]
    %v537 = vld [vmem:[#allocation2 + $0x40] sm:$0xff]
    %v538 = vld [vmem:[#allocation2 + $0x48] sm:$0xff]
    %v539 = vld [vmem:[#allocation2 + $0x50] sm:$0xff]
    %v540 = vld [vmem:[#allocation2 + $0x58] sm:$0xff]
    %v541 = vld [vmem:[#allocation2 + $0x60] sm:$0xff]
    %v542 = vld [vmem:[#allocation2 + $0x68] sm:$0xff]
    %v543 = vld [vmem:[#allocation2 + $0x70] sm:$0xff]
    %v544 = vld [vmem:[#allocation2 + $0x78] sm:$0xff]
    %v545 = vmax.f32 %v529, 0.0
    %v546 = vmax.f32 %v530, 0.0
    %v547 = vmax.f32 %v531, 0.0
    %v548 = vmax.f32 %v532, 0.0
    %v549 = vmax.f32 %v533, 0.0
    %v550 = vmax.f32 %v534, 0.0
    %v551 = vmax.f32 %v535, 0.0
    %v552 = vmax.f32 %v536, 0.0
    %v553 = vmax.f32 %v537, 0.0
    %v554 = vmax.f32 %v538, 0.0
    %v555 = vmax.f32 %v539, 0.0
    %v556 = vmax.f32 %v540, 0.0
    %v557 = vmax.f32 %v541, 0.0
    %v558 = vmax.f32 %v542, 0.0
    %v559 = vmax.f32 %v543, 0.0
    %v560 = vmax.f32 %v544, 0.0
    %v561 = vpack.c.bf16 %v546, %v545
    %v562 = vpack.c.bf16 %v548, %v547
    %v563 = vpack.c.bf16 %v550, %v549
    %v564 = vpack.c.bf16 %v552, %v551
    %v565 = vpack.c.bf16 %v554, %v553
    %v566 = vpack.c.bf16 %v556, %v555
    %v567 = vpack.c.bf16 %v558, %v557
    %v568 = vpack.c.bf16 %v560, %v559
    %v569 = vld [vmem:[%s4] sm:$0xf]
    %v570 = vld [vmem:[%s4 + $0x4] sm:$0xf]
    %v571 = vld [vmem:[%s4 + $0x8] sm:$0xf]
    %v572 = vld [vmem:[%s4 + $0xc] sm:$0xf]
    %v573 = vld [vmem:[%s4 + $0x10] sm:$0xf]
    %v574 = vld [vmem:[%s4 + $0x14] sm:$0xf]
    %v575 = vld [vmem:[%s4 + $0x18] sm:$0xf]
    %v576 = vld [vmem:[%s4 + $0x1c] sm:$0xf]
    %v577 = vld [vmem:[%s4 + $0x20] sm:$0xf]
    %v578 = vld [vmem:[%s4 + $0x24] sm:$0xf]
    %v579 = vld [vmem:[%s4 + $0x28] sm:$0xf]
    %v580 = vld [vmem:[%s4 + $0x2c] sm:$0xf]
    %v581 = vld [vmem:[%s4 + $0x30] sm:$0xf]
    %v582 = vld [vmem:[%s4 + $0x34] sm:$0xf]
    %v583 = vld [vmem:[%s4 + $0x38] sm:$0xf]
    %v584 = vld [vmem:[%s4 + $0x3c] sm:$0xf]
    %v585 = vld [vmem:[%s5] sm:$0x1]
    %v587 = vlaneseq
    %v588 = vshrl.u32 %v587, 7
    %v589 = vsub.s32 0, %v588
    %v590 = vrot.slane %v585, %v589
    %v608 = vunpack.c.l.b16 %v569
    %v609 = vunpack.c.l.b16 %v570
    %v610 = vunpack.c.l.b16 %v571
    %v611 = vunpack.c.l.b16 %v572
    %v612 = vunpack.c.l.b16 %v573
    %v613 = vunpack.c.l.b16 %v574
    %v614 = vunpack.c.l.b16 %v575
    %v615 = vunpack.c.l.b16 %v576
    %v616 = vunpack.c.l.b16 %v577
    %v617 = vunpack.c.l.b16 %v578
    %v618 = vunpack.c.l.b16 %v579
    %v619 = vunpack.c.l.b16 %v580
    %v620 = vunpack.c.l.b16 %v581
    %v621 = vunpack.c.l.b16 %v582
    %v622 = vunpack.c.l.b16 %v583
    %v623 = vunpack.c.l.b16 %v584
    %v624 = vpack.c.b16 %v609, %v608
    %v625 = vpack.c.b16 %v611, %v610
    %v626 = vpack.c.b16 %v613, %v612
    %v627 = vpack.c.b16 %v615, %v614
    %v628 = vpack.c.b16 %v617, %v616
    %v629 = vpack.c.b16 %v619, %v618
    %v630 = vpack.c.b16 %v621, %v620
    %v631 = vpack.c.b16 %v623, %v622
    %640 = vmatprep.subr.bf16.mxu0 0
    %641 = vmatpush1.bf16.msra.mxu0 %v631
    %642 = vmatprep.subr.bf16.mxu0 0
    %643 = vmatpush1.bf16.msra.mxu0 %v630
    %644 = vmatprep.subr.bf16.mxu0 0
    %645 = vmatpush1.bf16.msra.mxu0 %v629
    %646 = vmatprep.subr.bf16.mxu0 0
    %647 = vmatpush1.bf16.msra.mxu0 %v628
    %648 = vmatprep.subr.bf16.mxu0 0
    %649 = vmatpush1.bf16.msra.mxu0 %v627
    %650 = vmatprep.subr.bf16.mxu0 0
    %651 = vmatpush1.bf16.msra.mxu0 %v626
    %652 = vmatprep.subr.bf16.mxu0 0
    %653 = vmatpush1.bf16.msra.mxu0 %v625
    %654 = vmatprep.subr.bf16.mxu0 0
    %655 = vmatpush1.bf16.msra.mxu0 %v624
    %656 = vmatprep.subr.bf16.mxu0 0
    %657 = vmatpush2.bf16.msra.mxu0 0
    %658 = vmatprep.subr.bf16.mxu0 0
    %659 = vmatpush2.bf16.msra.mxu0 0
    %660 = vmatprep.subr.bf16.mxu0 0
    %661 = vmatpush2.bf16.msra.mxu0 0
    %662 = vmatprep.subr.bf16.mxu0 0
    %663 = vmatpush2.bf16.msra.mxu0 0
    %664 = vmatprep.subr.bf16.mxu0 0
    %665 = vmatpush2.bf16.msra.mxu0 0
    %666 = vmatprep.subr.bf16.mxu0 0
    %667 = vmatpush2.bf16.msra.mxu0 0
    %668 = vmatprep.subr.bf16.mxu0 0
    %669 = vmatpush2.bf16.msra.mxu0 0
    %670 = vmatprep.subr.bf16.mxu0 0
    %671 = vmatpush2.bf16.msra.mxu0 0
    %672 = vmatprep.mubr.bf16.mxu0 0
    %673 = vmatmul.mubr.bf16.gmra.mxu0 %v561
    %v674 = vpop.f32.mrf.mxu0
    %v675 = vadd.f32 %v590, %v674
    %v676 = vpop.f32.mrf.mxu0
    %v677 = vpop.f32.mrf.mxu0
    %v678 = vadd.f32 %v590, %v677
    %v679 = vpop.f32.mrf.mxu0
    %680 = vmatprep.mubr.bf16.mxu0 0
    %681 = vmatmul.mubr.bf16.gmra.mxu0 %v562
    %v682 = vpop.f32.mrf.mxu0
    %v683 = vadd.f32 %v590, %v682
    %v684 = vpop.f32.mrf.mxu0
    %v685 = vpop.f32.mrf.mxu0
    %v686 = vadd.f32 %v590, %v685
    %v687 = vpop.f32.mrf.mxu0
    %688 = vmatprep.mubr.bf16.mxu0 0
    %689 = vmatmul.mubr.bf16.gmra.mxu0 %v563
    %v690 = vpop.f32.mrf.mxu0
    %v691 = vadd.f32 %v590, %v690
    %v692 = vpop.f32.mrf.mxu0
    %v693 = vpop.f32.mrf.mxu0
    %v694 = vadd.f32 %v590, %v693
    %v695 = vpop.f32.mrf.mxu0
    %696 = vmatprep.mubr.bf16.mxu0 0
    %697 = vmatmul.mubr.bf16.gmra.mxu0 %v564
    %v698 = vpop.f32.mrf.mxu0
    %v699 = vadd.f32 %v590, %v698
    %v700 = vpop.f32.mrf.mxu0
    %v701 = vpop.f32.mrf.mxu0
    %v702 = vadd.f32 %v590, %v701
    %v703 = vpop.f32.mrf.mxu0
    %704 = vmatprep.mubr.bf16.mxu0 0
    %705 = vmatmul.mubr.bf16.gmra.mxu0 %v565
    %v706 = vpop.f32.mrf.mxu0
    %v707 = vadd.f32 %v590, %v706
    %v708 = vpop.f32.mrf.mxu0
    %v709 = vpop.f32.mrf.mxu0
    %v710 = vadd.f32 %v590, %v709
    %v711 = vpop.f32.mrf.mxu0
    %712 = vmatprep.mubr.bf16.mxu0 0
    %713 = vmatmul.mubr.bf16.gmra.mxu0 %v566
    %v714 = vpop.f32.mrf.mxu0
    %v715 = vadd.f32 %v590, %v714
    %v716 = vpop.f32.mrf.mxu0
    %v717 = vpop.f32.mrf.mxu0
    %v718 = vadd.f32 %v590, %v717
    %v719 = vpop.f32.mrf.mxu0
    %720 = vmatprep.mubr.bf16.mxu0 0
    %721 = vmatmul.mubr.bf16.gmra.mxu0 %v567
    %v722 = vpop.f32.mrf.mxu0
    %v723 = vadd.f32 %v590, %v722
    %v724 = vpop.f32.mrf.mxu0
    %v725 = vpop.f32.mrf.mxu0
    %v726 = vadd.f32 %v590, %v725
    %v727 = vpop.f32.mrf.mxu0
    %728 = vmatprep.mubr.bf16.mxu0 0
    %729 = vmatmul.mubr.bf16.gmra.mxu0 %v568
    %v730 = vpop.f32.mrf.mxu0
    %v731 = vadd.f32 %v590, %v730
    %v732 = vpop.f32.mrf.mxu0
    %v733 = vpop.f32.mrf.mxu0
    %v734 = vadd.f32 %v590, %v733
    %v735 = vpop.f32.mrf.mxu0
    %736 = vdwg.mxu0
    %737 = vst [vmem:[%s6] sm:$0xff] %v675
    %738 = vst [vmem:[%s6 + $0x8] sm:$0xff] %v678
    %739 = vst [vmem:[%s6 + $0x10] sm:$0xff] %v683
    %740 = vst [vmem:[%s6 + $0x18] sm:$0xff] %v686
    %741 = vst [vmem:[%s6 + $0x20] sm:$0xff] %v691
    %742 = vst [vmem:[%s6 + $0x28] sm:$0xff] %v694
    %743 = vst [vmem:[%s6 + $0x30] sm:$0xff] %v699
    %744 = vst [vmem:[%s6 + $0x38] sm:$0xff] %v702
    %745 = vst [vmem:[%s6 + $0x40] sm:$0xff] %v707
    %746 = vst [vmem:[%s6 + $0x48] sm:$0xff] %v710
    %747 = vst [vmem:[%s6 + $0x50] sm:$0xff] %v715
    %748 = vst [vmem:[%s6 + $0x58] sm:$0xff] %v718
    %749 = vst [vmem:[%s6 + $0x60] sm:$0xff] %v723
    %750 = vst [vmem:[%s6 + $0x68] sm:$0xff] %v726
    %751 = vst [vmem:[%s6 + $0x70] sm:$0xff] %v731
    %752 = vst [vmem:[%s6 + $0x78] sm:$0xff] %v734
  $region33: #{mini_gnn_forward.5} parent=0 // pred_fallthru
    _
  // Predicated region
  $region34: #{mini_gnn_forward.5} parent=0 // pred_check
    _
  $region35: #{mini_gnn_forward.5} parent=0 // pred_check_branch
    %754 = sbr.rel (0) target = $region37
  $region36: #{mini_gnn_forward.5} parent=0 // pred_region
    _
  $region37: #{mini_gnn_forward.5} parent=0 // pred_fallthru
    _
  // Predicated region
  $region38: #{mini_gnn_forward.5} parent=0 // pred_check
    _
  $region39: #{mini_gnn_forward.5} parent=0 // pred_check_branch
    %756 = sbr.rel (0) target = $region41
  $region40: #{mini_gnn_forward.5} parent=0 // pred_region
    _
  $region41: #{mini_gnn_forward.5} parent=0 // pred_fallthru
    _

// kernel: mini_gnn_forward.3
$region0: #{mini_gnn_forward.3}
  #allocation0 [shape = 'u32[]', space=smem, size = 0x4, offset = 0x4, fixed_abs, tag = 'smem constant byte address 0x4 - core index']
  #allocation1 [shape = 'u32[144,128]{1,0:T(1,128)}', space=vmem, size = 0x12000, scoped, tag = 'internal scratch']
  %s0 = inlined_call_operand.vmem [shape: bf16[128,128], index: 0, kind: input, shape index: {}]
  %s1 = inlined_call_operand.vmem [shape: bf16[128,384], index: 1, kind: input, shape index: {}]
  %s2 = inlined_call_operand.vmem [shape: f32[1,128], index: 2, kind: input, shape index: {}]
  %s3 = inlined_call_operand.vmem [shape: bf16[128,256], index: 3, kind: output, shape index: {0}]
  %s4 = inlined_call_operand.vmem [shape: f32[128,128], index: 4, kind: output, shape index: {1}]
  %5 = xla_tuple %s3, %s4
  %s6 = sld [smem:[#allocation0]]
  $region30: #{mini_gnn_forward.3} parent=0
    _
  %s8 = ssub.s32 1, %s6
  %s9 = scalar_select 0, %s8, %s6
  // Predicated region
  $region2: #{mini_gnn_forward.3} parent=0 // pred_check
    _
  $region3: #{mini_gnn_forward.3} parent=0 // pred_check_branch
    %11 = sbr.rel (0) target = $region5
  $region4: #{mini_gnn_forward.3} parent=0 // pred_region
    _
  $region5: #{mini_gnn_forward.3} parent=0 // pred_fallthru
    _
  // Predicated region
  $region6: #{mini_gnn_forward.3} parent=0 // pred_check
    _
  $region7: #{mini_gnn_forward.3} parent=0 // pred_check_branch
    %13 = sbr.rel (0) target = $region9
  $region8: #{mini_gnn_forward.3} parent=0 // pred_region
    _
  $region9: #{mini_gnn_forward.3} parent=0 // pred_fallthru
    _
  // Predicated region
  $region10: #{mini_gnn_forward.3} parent=0 // pred_check
    _
  $region11: #{mini_gnn_forward.3} parent=0 // pred_check_branch
    %15 = sbr.rel (0) target = $region13
  $region12: #{mini_gnn_forward.3} parent=0 // pred_region
    _
  $region13: #{mini_gnn_forward.3} parent=0 // pred_fallthru
    _
  %v17 = vld [vmem:[%s0] sm:$0xf]
  %v18 = vld [vmem:[%s0 + $0x4] sm:$0xf]
  %v19 = vld [vmem:[%s0 + $0x8] sm:$0xf]
  %v20 = vld [vmem:[%s0 + $0xc] sm:$0xf]
  %v21 = vld [vmem:[%s0 + $0x10] sm:$0xf]
  %v22 = vld [vmem:[%s0 + $0x14] sm:$0xf]
  %v23 = vld [vmem:[%s0 + $0x18] sm:$0xf]
  %v24 = vld [vmem:[%s0 + $0x1c] sm:$0xf]
  %v25 = vld [vmem:[%s0 + $0x20] sm:$0xf]
  %v26 = vld [vmem:[%s0 + $0x24] sm:$0xf]
  %v27 = vld [vmem:[%s0 + $0x28] sm:$0xf]
  %v28 = vld [vmem:[%s0 + $0x2c] sm:$0xf]
  %v29 = vld [vmem:[%s0 + $0x30] sm:$0xf]
  %v30 = vld [vmem:[%s0 + $0x34] sm:$0xf]
  %v31 = vld [vmem:[%s0 + $0x38] sm:$0xf]
  %v32 = vld [vmem:[%s0 + $0x3c] sm:$0xf]
  %v33 = vld [vmem:[%s1] sm:$0xff]
  %v34 = vld [vmem:[%s1 + $0x8] sm:$0xf]
  %v35 = vld [vmem:[%s1 + $0xc] sm:$0xff]
  %v36 = vld [vmem:[%s1 + $0x14] sm:$0xf]
  %v37 = vld [vmem:[%s1 + $0x18] sm:$0xff]
  %v38 = vld [vmem:[%s1 + $0x20] sm:$0xf]
  %v39 = vld [vmem:[%s1 + $0x24] sm:$0xff]
  %v40 = vld [vmem:[%s1 + $0x2c] sm:$0xf]
  %v41 = vld [vmem:[%s1 + $0x30] sm:$0xff]
  %v42 = vld [vmem:[%s1 + $0x38] sm:$0xf]
  %v43 = vld [vmem:[%s1 + $0x3c] sm:$0xff]
  %v44 = vld [vmem:[%s1 + $0x44] sm:$0xf]
  %v45 = vld [vmem:[%s1 + $0x48] sm:$0xff]
  %v46 = vld [vmem:[%s1 + $0x50] sm:$0xf]
  %v47 = vld [vmem:[%s1 + $0x54] sm:$0xff]
  %v48 = vld [vmem:[%s1 + $0x5c] sm:$0xf]
  %v49 = vld [vmem:[%s1 + $0x60] sm:$0xff]
  %v50 = vld [vmem:[%s1 + $0x68] sm:$0xf]
  %v51 = vld [vmem:[%s1 + $0x6c] sm:$0xff]
  %v52 = vld [vmem:[%s1 + $0x74] sm:$0xf]
  %v53 = vld [vmem:[%s1 + $0x78] sm:$0xff]
  %v54 = vld [vmem:[%s1 + $0x80] sm:$0xf]
  %v55 = vld [vmem:[%s1 + $0x84] sm:$0xff]
  %v56 = vld [vmem:[%s1 + $0x8c] sm:$0xf]
  %v57 = vld [vmem:[%s1 + $0x90] sm:$0xff]
  %v58 = vld [vmem:[%s1 + $0x98] sm:$0xf]
  %v59 = vld [vmem:[%s1 + $0x9c] sm:$0xff]
  %v60 = vld [vmem:[%s1 + $0xa4] sm:$0xf]
  %v61 = vld [vmem:[%s1 + $0xa8] sm:$0xff]
  %v62 = vld [vmem:[%s1 + $0xb0] sm:$0xf]
  %v63 = vld [vmem:[%s1 + $0xb4] sm:$0xff]
  %v64 = vld [vmem:[%s1 + $0xbc] sm:$0xf]
  %v81 = vunpack.c.l.b16 %v17
  %v82 = vunpack.c.l.b16 %v18
  %v83 = vunpack.c.l.b16 %v19
  %v84 = vunpack.c.l.b16 %v20
  %v85 = vunpack.c.l.b16 %v21
  %v86 = vunpack.c.l.b16 %v22
  %v87 = vunpack.c.l.b16 %v23
  %v88 = vunpack.c.l.b16 %v24
  %v89 = vunpack.c.l.b16 %v25
  %v90 = vunpack.c.l.b16 %v26
  %v91 = vunpack.c.l.b16 %v27
  %v92 = vunpack.c.l.b16 %v28
  %v93 = vunpack.c.l.b16 %v29
  %v94 = vunpack.c.l.b16 %v30
  %v95 = vunpack.c.l.b16 %v31
  %v96 = vunpack.c.l.b16 %v32
  %v97 = vpack.c.b16 %v82, %v81
  %v98 = vpack.c.b16 %v84, %v83
  %v99 = vpack.c.b16 %v86, %v85
  %v100 = vpack.c.b16 %v88, %v87
  %v101 = vpack.c.b16 %v90, %v89
  %v102 = vpack.c.b16 %v92, %v91
  %v103 = vpack.c.b16 %v94, %v93
  %v104 = vpack.c.b16 %v96, %v95
  %v145 = vunpack.c.l.b16 %v33
  %v146 = vunpack.c.h.b16 %v33
  %v147 = vunpack.c.l.b16 %v34
  %v148 = vunpack.c.l.b16 %v35
  %v149 = vunpack.c.h.b16 %v35
  %v150 = vunpack.c.l.b16 %v36
  %v151 = vunpack.c.l.b16 %v37
  %v152 = vunpack.c.h.b16 %v37
  %v153 = vunpack.c.l.b16 %v38
  %v154 = vunpack.c.l.b16 %v39
  %v155 = vunpack.c.h.b16 %v39
  %v156 = vunpack.c.l.b16 %v40
  %v157 = vunpack.c.l.b16 %v41
  %v158 = vunpack.c.h.b16 %v41
  %v159 = vunpack.c.l.b16 %v42
  %v160 = vunpack.c.l.b16 %v43
  %v161 = vunpack.c.h.b16 %v43
  %v162 = vunpack.c.l.b16 %v44
  %v163 = vunpack.c.l.b16 %v45
  %v164 = vunpack.c.h.b16 %v45
  %v165 = vunpack.c.l.b16 %v46
  %v166 = vunpack.c.l.b16 %v47
  %v167 = vunpack.c.h.b16 %v47
  %v168 = vunpack.c.l.b16 %v48
  %v169 = vunpack.c.l.b16 %v49
  %v170 = vunpack.c.h.b16 %v49
  %v171 = vunpack.c.l.b16 %v50
  %v172 = vunpack.c.l.b16 %v51
  %v173 = vunpack.c.h.b16 %v51
  %v174 = vunpack.c.l.b16 %v52
  %v175 = vunpack.c.l.b16 %v53
  %v176 = vunpack.c.h.b16 %v53
  %v177 = vunpack.c.l.b16 %v54
  %v178 = vunpack.c.l.b16 %v55
  %v179 = vunpack.c.h.b16 %v55
  %v180 = vunpack.c.l.b16 %v56
  %v181 = vunpack.c.l.b16 %v57
  %v182 = vunpack.c.h.b16 %v57
  %v183 = vunpack.c.l.b16 %v58
  %v184 = vunpack.c.l.b16 %v59
  %v185 = vunpack.c.h.b16 %v59
  %v186 = vunpack.c.l.b16 %v60
  %v187 = vunpack.c.l.b16 %v61
  %v188 = vunpack.c.h.b16 %v61
  %v189 = vunpack.c.l.b16 %v62
  %v190 = vunpack.c.l.b16 %v63
  %v191 = vunpack.c.h.b16 %v63
  %v192 = vunpack.c.l.b16 %v64
  %v193 = vpack.c.b16 %v148, %v145
  %v194 = vpack.c.b16 %v149, %v146
  %v195 = vpack.c.b16 %v150, %v147
  %v196 = vpack.c.b16 %v154, %v151
  %v197 = vpack.c.b16 %v155, %v152
  %v198 = vpack.c.b16 %v156, %v153
  %v199 = vpack.c.b16 %v160, %v157
  %v200 = vpack.c.b16 %v161, %v158
  %v201 = vpack.c.b16 %v162, %v159
  %v202 = vpack.c.b16 %v166, %v163
  %v203 = vpack.c.b16 %v167, %v164
  %v204 = vpack.c.b16 %v168, %v165
  %v205 = vpack.c.b16 %v172, %v169
  %v206 = vpack.c.b16 %v173, %v170
  %v207 = vpack.c.b16 %v174, %v171
  %v208 = vpack.c.b16 %v178, %v175
  %v209 = vpack.c.b16 %v179, %v176
  %v210 = vpack.c.b16 %v180, %v177
  %v211 = vpack.c.b16 %v184, %v181
  %v212 = vpack.c.b16 %v185, %v182
  %v213 = vpack.c.b16 %v186, %v183
  %v214 = vpack.c.b16 %v190, %v187
  %v215 = vpack.c.b16 %v191, %v188
  %v216 = vpack.c.b16 %v192, %v189
  %241 = vmatprep.subr.bf16.mxu0 %v215
  %242 = vmatpush1.bf16.msra.mxu0 %v214
  %243 = vmatprep.subr.bf16.mxu0 %v212
  %244 = vmatpush1.bf16.msra.mxu0 %v211
  %245 = vmatprep.subr.bf16.mxu0 %v209
  %246 = vmatpush1.bf16.msra.mxu0 %v208
  %247 = vmatprep.subr.bf16.mxu0 %v206
  %248 = vmatpush1.bf16.msra.mxu0 %v205
  %249 = vmatprep.subr.bf16.mxu0 %v203
  %250 = vmatpush1.bf16.msra.mxu0 %v202
  %251 = vmatprep.subr.bf16.mxu0 %v200
  %252 = vmatpush1.bf16.msra.mxu0 %v199
  %253 = vmatprep.subr.bf16.mxu0 %v197
  %254 = vmatpush1.bf16.msra.mxu0 %v196
  %255 = vmatprep.subr.bf16.mxu0 %v194
  %256 = vmatpush1.bf16.msra.mxu0 %v193
  %257 = vmatprep.subr.bf16.mxu0 0
  %258 = vmatpush2.bf16.msra.mxu0 0
  %259 = vmatprep.subr.bf16.mxu0 0
  %260 = vmatpush2.bf16.msra.mxu0 0
  %261 = vmatprep.subr.bf16.mxu0 0
  %262 = vmatpush2.bf16.msra.mxu0 0
  %263 = vmatprep.subr.bf16.mxu0 0
  %264 = vmatpush2.bf16.msra.mxu0 0
  %265 = vmatprep.subr.bf16.mxu0 0
  %266 = vmatpush2.bf16.msra.mxu0 0
  %267 = vmatprep.subr.bf16.mxu0 0
  %268 = vmatpush2.bf16.msra.mxu0 0
  %269 = vmatprep.subr.bf16.mxu0 0
  %270 = vmatpush2.bf16.msra.mxu0 0
  %271 = vmatprep.subr.bf16.mxu0 0
  %272 = vmatpush2.bf16.msra.mxu0 0
  %273 = vmatprep.mubr.bf16.mxu0 0
  %274 = vmatmul.mubr.bf16.gmra.mxu0 %v97
  %v275 = vpop.f32.mrf.mxu0
  %v276 = vadd.f32 0.0, %v275
  %v277 = vpop.f32.mrf.mxu0
  %v278 = vadd.f32 0.0, %v277
  %v279 = vpop.f32.mrf.mxu0
  %v280 = vadd.f32 0.0, %v279
  %v281 = vpop.f32.mrf.mxu0
  %v282 = vadd.f32 0.0, %v281
  %283 = vmatprep.mubr.bf16.mxu0 0
  %284 = vmatmul.mubr.bf16.gmra.mxu0 %v98
  %v285 = vpop.f32.mrf.mxu0
  %v286 = vadd.f32 0.0, %v285
  %v287 = vpop.f32.mrf.mxu0
  %v288 = vadd.f32 0.0, %v287
  %v289 = vpop.f32.mrf.mxu0
  %v290 = vadd.f32 0.0, %v289
  %v291 = vpop.f32.mrf.mxu0
  %v292 = vadd.f32 0.0, %v291
  %293 = vmatprep.mubr.bf16.mxu0 0
  %294 = vmatmul.mubr.bf16.gmra.mxu0 %v99
  %v295 = vpop.f32.mrf.mxu0
  %v296 = vadd.f32 0.0, %v295
  %v297 = vpop.f32.mrf.mxu0
  %v298 = vadd.f32 0.0, %v297
  %v299 = vpop.f32.mrf.mxu0
  %v300 = vadd.f32 0.0, %v299
  %v301 = vpop.f32.mrf.mxu0
  %v302 = vadd.f32 0.0, %v301
  %303 = vmatprep.mubr.bf16.mxu0 0
  %304 = vmatmul.mubr.bf16.gmra.mxu0 %v100
  %v305 = vpop.f32.mrf.mxu0
  %v306 = vadd.f32 0.0, %v305
  %v307 = vpop.f32.mrf.mxu0
  %v308 = vadd.f32 0.0, %v307
  %v309 = vpop.f32.mrf.mxu0
  %v310 = vadd.f32 0.0, %v309
  %v311 = vpop.f32.mrf.mxu0
  %v312 = vadd.f32 0.0, %v311
  %313 = vmatprep.mubr.bf16.mxu0 0
  %314 = vmatmul.mubr.bf16.gmra.mxu0 %v101
  %v315 = vpop.f32.mrf.mxu0
  %v316 = vadd.f32 0.0, %v315
  %v317 = vpop.f32.mrf.mxu0
  %v318 = vadd.f32 0.0, %v317
  %v319 = vpop.f32.mrf.mxu0
  %v320 = vadd.f32 0.0, %v319
  %v321 = vpop.f32.mrf.mxu0
  %v322 = vadd.f32 0.0, %v321
  %323 = vmatprep.mubr.bf16.mxu0 0
  %324 = vmatmul.mubr.bf16.gmra.mxu0 %v102
  %v325 = vpop.f32.mrf.mxu0
  %v326 = vadd.f32 0.0, %v325
  %v327 = vpop.f32.mrf.mxu0
  %v328 = vadd.f32 0.0, %v327
  %v329 = vpop.f32.mrf.mxu0
  %v330 = vadd.f32 0.0, %v329
  %v331 = vpop.f32.mrf.mxu0
  %v332 = vadd.f32 0.0, %v331
  %333 = vmatprep.mubr.bf16.mxu0 0
  %334 = vmatmul.mubr.bf16.gmra.mxu0 %v103
  %v335 = vpop.f32.mrf.mxu0
  %v336 = vadd.f32 0.0, %v335
  %v337 = vpop.f32.mrf.mxu0
  %v338 = vadd.f32 0.0, %v337
  %v339 = vpop.f32.mrf.mxu0
  %v340 = vadd.f32 0.0, %v339
  %v341 = vpop.f32.mrf.mxu0
  %v342 = vadd.f32 0.0, %v341
  %343 = vmatprep.mubr.bf16.mxu0 0
  %344 = vmatmul.mubr.bf16.gmra.mxu0 %v104
  %v345 = vpop.f32.mrf.mxu0
  %v346 = vadd.f32 0.0, %v345
  %v347 = vpop.f32.mrf.mxu0
  %v348 = vadd.f32 0.0, %v347
  %v349 = vpop.f32.mrf.mxu0
  %v350 = vadd.f32 0.0, %v349
  %v351 = vpop.f32.mrf.mxu0
  %v352 = vadd.f32 0.0, %v351
  %353 = vdwg.mxu0
  %354 = vmatprep.subr.bf16.mxu0 0
  %355 = vmatpush1.bf16.msra.mxu0 %v216
  %356 = vmatprep.subr.bf16.mxu0 0
  %357 = vmatpush1.bf16.msra.mxu0 %v213
  %358 = vmatprep.subr.bf16.mxu0 0
  %359 = vmatpush1.bf16.msra.mxu0 %v210
  %360 = vmatprep.subr.bf16.mxu0 0
  %361 = vmatpush1.bf16.msra.mxu0 %v207
  %362 = vmatprep.subr.bf16.mxu0 0
  %363 = vmatpush1.bf16.msra.mxu0 %v204
  %364 = vmatprep.subr.bf16.mxu0 0
  %365 = vmatpush1.bf16.msra.mxu0 %v201
  %366 = vmatprep.subr.bf16.mxu0 0
  %367 = vmatpush1.bf16.msra.mxu0 %v198
  %368 = vmatprep.subr.bf16.mxu0 0
  %369 = vmatpush1.bf16.msra.mxu0 %v195
  %370 = vmatprep.subr.bf16.mxu0 0
  %371 = vmatpush2.bf16.msra.mxu0 0
  %372 = vmatprep.subr.bf16.mxu0 0
  %373 = vmatpush2.bf16.msra.mxu0 0
  %374 = vmatprep.subr.bf16.mxu0 0
  %375 = vmatpush2.bf16.msra.mxu0 0
  %376 = vmatprep.subr.bf16.mxu0 0
  %377 = vmatpush2.bf16.msra.mxu0 0
  %378 = vmatprep.subr.bf16.mxu0 0
  %379 = vmatpush2.bf16.msra.mxu0 0
  %380 = vmatprep.subr.bf16.mxu0 0
  %381 = vmatpush2.bf16.msra.mxu0 0
  %382 = vmatprep.subr.bf16.mxu0 0
  %383 = vmatpush2.bf16.msra.mxu0 0
  %384 = vmatprep.subr.bf16.mxu0 0
  %385 = vmatpush2.bf16.msra.mxu0 0
  %386 = vmatprep.mubr.bf16.mxu0 0
  %387 = vmatmul.mubr.bf16.gmra.mxu0 %v97
  %v388 = vpop.f32.mrf.mxu0
  %v389 = vadd.f32 0.0, %v388
  %v390 = vpop.f32.mrf.mxu0
  %v391 = vpop.f32.mrf.mxu0
  %v392 = vadd.f32 0.0, %v391
  %v393 = vpop.f32.mrf.mxu0
  %394 = vmatprep.mubr.bf16.mxu0 0
  %395 = vmatmul.mubr.bf16.gmra.mxu0 %v98
  %v396 = vpop.f32.mrf.mxu0
  %v397 = vadd.f32 0.0, %v396
  %v398 = vpop.f32.mrf.mxu0
  %v399 = vpop.f32.mrf.mxu0
  %v400 = vadd.f32 0.0, %v399
  %v401 = vpop.f32.mrf.mxu0
  %402 = vmatprep.mubr.bf16.mxu0 0
  %403 = vmatmul.mubr.bf16.gmra.mxu0 %v99
  %v404 = vpop.f32.mrf.mxu0
  %v405 = vadd.f32 0.0, %v404
  %v406 = vpop.f32.mrf.mxu0
  %v407 = vpop.f32.mrf.mxu0
  %v408 = vadd.f32 0.0, %v407
  %v409 = vpop.f32.mrf.mxu0
  %410 = vmatprep.mubr.bf16.mxu0 0
  %411 = vmatmul.mubr.bf16.gmra.mxu0 %v100
  %v412 = vpop.f32.mrf.mxu0
  %v413 = vadd.f32 0.0, %v412
  %v414 = vpop.f32.mrf.mxu0
  %v415 = vpop.f32.mrf.mxu0
  %v416 = vadd.f32 0.0, %v415
  %v417 = vpop.f32.mrf.mxu0
  %418 = vmatprep.mubr.bf16.mxu0 0
  %419 = vmatmul.mubr.bf16.gmra.mxu0 %v101
  %v420 = vpop.f32.mrf.mxu0
  %v421 = vadd.f32 0.0, %v420
  %v422 = vpop.f32.mrf.mxu0
  %v423 = vpop.f32.mrf.mxu0
  %v424 = vadd.f32 0.0, %v423
  %v425 = vpop.f32.mrf.mxu0
  %426 = vmatprep.mubr.bf16.mxu0 0
  %427 = vmatmul.mubr.bf16.gmra.mxu0 %v102
  %v428 = vpop.f32.mrf.mxu0
  %v429 = vadd.f32 0.0, %v428
  %v430 = vpop.f32.mrf.mxu0
  %v431 = vpop.f32.mrf.mxu0
  %v432 = vadd.f32 0.0, %v431
  %v433 = vpop.f32.mrf.mxu0
  %434 = vmatprep.mubr.bf16.mxu0 0
  %435 = vmatmul.mubr.bf16.gmra.mxu0 %v103
  %v436 = vpop.f32.mrf.mxu0
  %v437 = vadd.f32 0.0, %v436
  %v438 = vpop.f32.mrf.mxu0
  %v439 = vpop.f32.mrf.mxu0
  %v440 = vadd.f32 0.0, %v439
  %v441 = vpop.f32.mrf.mxu0
  %442 = vmatprep.mubr.bf16.mxu0 0
  %443 = vmatmul.mubr.bf16.gmra.mxu0 %v104
  %v444 = vpop.f32.mrf.mxu0
  %v445 = vadd.f32 0.0, %v444
  %v446 = vpop.f32.mrf.mxu0
  %v447 = vpop.f32.mrf.mxu0
  %v448 = vadd.f32 0.0, %v447
  %v449 = vpop.f32.mrf.mxu0
  %450 = vdwg.mxu0
  %v451 = vpack.c.bf16 %v280, %v276
  %v452 = vpack.c.bf16 %v282, %v278
  %v453 = vpack.c.bf16 %v290, %v286
  %v454 = vpack.c.bf16 %v292, %v288
  %v455 = vpack.c.bf16 %v300, %v296
  %v456 = vpack.c.bf16 %v302, %v298
  %v457 = vpack.c.bf16 %v310, %v306
  %v458 = vpack.c.bf16 %v312, %v308
  %v459 = vpack.c.bf16 %v320, %v316
  %v460 = vpack.c.bf16 %v322, %v318
  %v461 = vpack.c.bf16 %v330, %v326
  %v462 = vpack.c.bf16 %v332, %v328
  %v463 = vpack.c.bf16 %v340, %v336
  %v464 = vpack.c.bf16 %v342, %v338
  %v465 = vpack.c.bf16 %v350, %v346
  %v466 = vpack.c.bf16 %v352, %v348
  %v483 = vunpack.c.l.b16 %v451
  %v484 = vunpack.c.l.b16 %v452
  %v485 = vunpack.c.h.b16 %v451
  %v486 = vunpack.c.h.b16 %v452
  %v487 = vunpack.c.l.b16 %v453
  %v488 = vunpack.c.l.b16 %v454
  %v489 = vunpack.c.h.b16 %v453
  %v490 = vunpack.c.h.b16 %v454
  %v491 = vunpack.c.l.b16 %v455
  %v492 = vunpack.c.l.b16 %v456
  %v493 = vunpack.c.h.b16 %v455
  %v494 = vunpack.c.h.b16 %v456
  %v495 = vunpack.c.l.b16 %v457
  %v496 = vunpack.c.l.b16 %v458
  %v497 = vunpack.c.h.b16 %v457
  %v498 = vunpack.c.h.b16 %v458
  %v499 = vunpack.c.l.b16 %v459
  %v500 = vunpack.c.l.b16 %v460
  %v501 = vunpack.c.h.b16 %v459
  %v502 = vunpack.c.h.b16 %v460
  %v503 = vunpack.c.l.b16 %v461
  %v504 = vunpack.c.l.b16 %v462
  %v505 = vunpack.c.h.b16 %v461
  %v506 = vunpack.c.h.b16 %v462
  %v507 = vunpack.c.l.b16 %v463
  %v508 = vunpack.c.l.b16 %v464
  %v509 = vunpack.c.h.b16 %v463
  %v510 = vunpack.c.h.b16 %v464
  %v511 = vunpack.c.l.b16 %v465
  %v512 = vunpack.c.l.b16 %v466
  %v513 = vunpack.c.h.b16 %v465
  %v514 = vunpack.c.h.b16 %v466
  %v515 = vpack.c.b16 %v484, %v483
  %v516 = vpack.c.b16 %v486, %v485
  %v517 = vpack.c.b16 %v488, %v487
  %v518 = vpack.c.b16 %v490, %v489
  %v519 = vpack.c.b16 %v492, %v491
  %v520 = vpack.c.b16 %v494, %v493
  %v521 = vpack.c.b16 %v496, %v495
  %v522 = vpack.c.b16 %v498, %v497
  %v523 = vpack.c.b16 %v500, %v499
  %v524 = vpack.c.b16 %v502, %v501
  %v525 = vpack.c.b16 %v504, %v503
  %v526 = vpack.c.b16 %v506, %v505
  %v527 = vpack.c.b16 %v508, %v507
  %v528 = vpack.c.b16 %v510, %v509
  %v529 = vpack.c.b16 %v512, %v511
  %v530 = vpack.c.b16 %v514, %v513
  %547 = vst [vmem:[%s3] sm:$0xff] %v515
  %548 = vst [vmem:[%s3 + $0x8] sm:$0xff] %v516
  %549 = vst [vmem:[%s3 + $0x10] sm:$0xff] %v517
  %550 = vst [vmem:[%s3 + $0x18] sm:$0xff] %v518
  %551 = vst [vmem:[%s3 + $0x20] sm:$0xff] %v519
  %552 = vst [vmem:[%s3 + $0x28] sm:$0xff] %v520
  %553 = vst [vmem:[%s3 + $0x30] sm:$0xff] %v521
  %554 = vst [vmem:[%s3 + $0x38] sm:$0xff] %v522
  %555 = vst [vmem:[%s3 + $0x40] sm:$0xff] %v523
  %556 = vst [vmem:[%s3 + $0x48] sm:$0xff] %v524
  %557 = vst [vmem:[%s3 + $0x50] sm:$0xff] %v525
  %558 = vst [vmem:[%s3 + $0x58] sm:$0xff] %v526
  %559 = vst [vmem:[%s3 + $0x60] sm:$0xff] %v527
  %560 = vst [vmem:[%s3 + $0x68] sm:$0xff] %v528
  %561 = vst [vmem:[%s3 + $0x70] sm:$0xff] %v529
  %562 = vst [vmem:[%s3 + $0x78] sm:$0xff] %v530
  %v563 = vld [vmem:[%s2] sm:$0x1]
  %v565 = vlaneseq
  %v566 = vshrl.u32 %v565, 7
  %v567 = vsub.s32 0, %v566
  %v568 = vrot.slane %v563, %v567
  %v570 = vadd.f32 %v389, %v568
  %v571 = vadd.f32 %v392, %v568
  %v572 = vadd.f32 %v397, %v568
  %v573 = vadd.f32 %v400, %v568
  %v574 = vadd.f32 %v405, %v568
  %v575 = vadd.f32 %v408, %v568
  %v576 = vadd.f32 %v413, %v568
  %v577 = vadd.f32 %v416, %v568
  %v578 = vadd.f32 %v421, %v568
  %v579 = vadd.f32 %v424, %v568
  %v580 = vadd.f32 %v429, %v568
  %v581 = vadd.f32 %v432, %v568
  %v582 = vadd.f32 %v437, %v568
  %v583 = vadd.f32 %v440, %v568
  %v584 = vadd.f32 %v445, %v568
  %v585 = vadd.f32 %v448, %v568
  %586 = vst [vmem:[%s4] sm:$0xff] %v570
  %587 = vst [vmem:[%s4 + $0x8] sm:$0xff] %v571
  %588 = vst [vmem:[%s4 + $0x10] sm:$0xff] %v572
  %589 = vst [vmem:[%s4 + $0x18] sm:$0xff] %v573
  %590 = vst [vmem:[%s4 + $0x20] sm:$0xff] %v574
  %591 = vst [vmem:[%s4 + $0x28] sm:$0xff] %v575
  %592 = vst [vmem:[%s4 + $0x30] sm:$0xff] %v576
  %593 = vst [vmem:[%s4 + $0x38] sm:$0xff] %v577
  %594 = vst [vmem:[%s4 + $0x40] sm:$0xff] %v578
  %595 = vst [vmem:[%s4 + $0x48] sm:$0xff] %v579
  %596 = vst [vmem:[%s4 + $0x50] sm:$0xff] %v580
  %597 = vst [vmem:[%s4 + $0x58] sm:$0xff] %v581
  %598 = vst [vmem:[%s4 + $0x60] sm:$0xff] %v582
  %599 = vst [vmem:[%s4 + $0x68] sm:$0xff] %v583
  %600 = vst [vmem:[%s4 + $0x70] sm:$0xff] %v584
  %601 = vst [vmem:[%s4 + $0x78] sm:$0xff] %v585
  // Predicated region
  $region14: #{mini_gnn_forward.3} parent=0 // pred_check
    _
  $region15: #{mini_gnn_forward.3} parent=0 // pred_check_branch
    %603 = sbr.rel (0) target = $region17
  $region16: #{mini_gnn_forward.3} parent=0 // pred_region
    _
  $region17: #{mini_gnn_forward.3} parent=0 // pred_fallthru
    _
  // Predicated region
  $region18: #{mini_gnn_forward.3} parent=0 // pred_check
    _
  $region19: #{mini_gnn_forward.3} parent=0 // pred_check_branch
    %605 = sbr.rel (0) target = $region21
  $region20: #{mini_gnn_forward.3} parent=0 // pred_region
    _
  $region21: #{mini_gnn_forward.3} parent=0 // pred_fallthru
    _
  // Predicated region
  $region22: #{mini_gnn_forward.3} parent=0 // pred_check
    _
  $region23: #{mini_gnn_forward.3} parent=0 // pred_check_branch
    %607 = sbr.rel (0) target = $region25
  $region24: #{mini_gnn_forward.3} parent=0 // pred_region
    _
  $region25: #{mini_gnn_forward.3} parent=0 // pred_fallthru
    _
  // Predicated region
  $region26: #{mini_gnn_forward.3} parent=0 // pred_check
    _
  $region27: #{mini_gnn_forward.3} parent=0 // pred_check_branch
    %609 = sbr.rel (0) target = $region29
  $region28: #{mini_gnn_forward.3} parent=0 // pred_region
    _
  $region29: #{mini_gnn_forward.3} parent=0 // pred_fallthru
    _

// kernel: mini_gnn_forward.4
$region0: #{mini_gnn_forward.4}
  #allocation0 [shape = 'u32[]', space=smem, size = 0x4, offset = 0x4, fixed_abs, tag = 'smem constant byte address 0x4 - core index']
  #allocation1 [shape = 'u32[144,128]{1,0:T(1,128)}', space=vmem, size = 0x12000, scoped, tag = 'internal scratch']
  #allocation2 [shape = 'f32[128,128]{1,0:T(8,128)}', space=vmem, size = 0x10000, scoped, tag = 'scratch operand']
  %s0 = inlined_call_operand.vmem [shape: bf16[128,256], index: 0, kind: input, shape index: {}]
  %s1 = inlined_call_operand.vmem [shape: f32[128,128], index: 1, kind: input, shape index: {}]
  %s2 = inlined_call_operand.vmem [shape: bf16[128,128], index: 2, kind: input, shape index: {}]
  %s3 = inlined_call_operand.vmem [shape: bf16[128,128], index: 3, kind: input, shape index: {}]
  %s4 = inlined_call_operand.vmem [shape: bf16[128,384], index: 4, kind: input, shape index: {}]
  %s5 = inlined_call_operand.vmem [shape: f32[1,128], index: 5, kind: input, shape index: {}]
  %s6 = inlined_call_operand.vmem [shape: bf16[128,256], index: 6, kind: output, shape index: {0}]
  %s7 = inlined_call_operand.vmem [shape: f32[128,128], index: 7, kind: output, shape index: {1}]
  %8 = xla_tuple %s6, %s7
  %s9 = sld [smem:[#allocation0]]
  $region50: #{mini_gnn_forward.4} parent=0
    _
  %s11 = ssub.s32 1, %s9
  %s12 = scalar_select 0, %s11, %s9
  // Predicated region
  $region2: #{mini_gnn_forward.4} parent=0 // pred_check
    _
  $region3: #{mini_gnn_forward.4} parent=0 // pred_check_branch
    %14 = sbr.rel (0) target = $region5
  $region4: #{mini_gnn_forward.4} parent=0 // pred_region
    _
  $region5: #{mini_gnn_forward.4} parent=0 // pred_fallthru
    _
  // Predicated region
  $region6: #{mini_gnn_forward.4} parent=0 // pred_check
    _
  $region7: #{mini_gnn_forward.4} parent=0 // pred_check_branch
    %16 = sbr.rel (0) target = $region9
  $region8: #{mini_gnn_forward.4} parent=0 // pred_region
    _
  $region9: #{mini_gnn_forward.4} parent=0 // pred_fallthru
    _
  // Predicated region
  $region10: #{mini_gnn_forward.4} parent=0 // pred_check
    _
  $region11: #{mini_gnn_forward.4} parent=0 // pred_check_branch
    %18 = sbr.rel (0) target = $region13
  $region12: #{mini_gnn_forward.4} parent=0 // pred_region
    _
  $region13: #{mini_gnn_forward.4} parent=0 // pred_fallthru
    _
  // Predicated region
  $region14: #{mini_gnn_forward.4} parent=0 // pred_check
    _
  $region15: #{mini_gnn_forward.4} parent=0 // pred_check_branch
    %20 = sbr.rel (0) target = $region17
  $region16: #{mini_gnn_forward.4} parent=0 // pred_region
    _
  $region17: #{mini_gnn_forward.4} parent=0 // pred_fallthru
    _
  // Predicated region
  $region18: #{mini_gnn_forward.4} parent=0 // pred_check
    _
  $region19: #{mini_gnn_forward.4} parent=0 // pred_check_branch
    %22 = sbr.rel (0) target = $region21
  $region20: #{mini_gnn_forward.4} parent=0 // pred_region
    _
  $region21: #{mini_gnn_forward.4} parent=0 // pred_fallthru
    _
  // Predicated region
  $region22: #{mini_gnn_forward.4} parent=0 // pred_check
    _
  $region23: #{mini_gnn_forward.4} parent=0 // pred_check_branch
    %24 = sbr.rel (0) target = $region25
  $region24: #{mini_gnn_forward.4} parent=0 // pred_region
    _
  $region25: #{mini_gnn_forward.4} parent=0 // pred_fallthru
    _
  %p26 = scmp.eq.s32.totalorder 0, 0
  // Predicated region
  $region26: #{mini_gnn_forward.4} parent=0 // pred_check
    %p27 = pneg %p26
  $region27: #{mini_gnn_forward.4} parent=0 // pred_check_branch
    %29 = sbr.rel (%p27) target = $region29
  $region28: #{mini_gnn_forward.4} parent=0 // pred_region
    %v30 = vld [vmem:[%s1] sm:$0xff]
    %v31 = vld [vmem:[%s1 + $0x8] sm:$0xff]
    %v32 = vld [vmem:[%s1 + $0x10] sm:$0xff]
    %v33 = vld [vmem:[%s1 + $0x18] sm:$0xff]
    %v34 = vld [vmem:[%s1 + $0x20] sm:$0xff]
    %v35 = vld [vmem:[%s1 + $0x28] sm:$0xff]
    %v36 = vld [vmem:[%s1 + $0x30] sm:$0xff]
    %v37 = vld [vmem:[%s1 + $0x38] sm:$0xff]
    %v38 = vld [vmem:[%s1 + $0x40] sm:$0xff]
    %v39 = vld [vmem:[%s1 + $0x48] sm:$0xff]
    %v40 = vld [vmem:[%s1 + $0x50] sm:$0xff]
    %v41 = vld [vmem:[%s1 + $0x58] sm:$0xff]
    %v42 = vld [vmem:[%s1 + $0x60] sm:$0xff]
    %v43 = vld [vmem:[%s1 + $0x68] sm:$0xff]
    %v44 = vld [vmem:[%s1 + $0x70] sm:$0xff]
    %v45 = vld [vmem:[%s1 + $0x78] sm:$0xff]
    %46 = vst [vmem:[#allocation2] sm:$0xff] %v30
    %47 = vst [vmem:[#allocation2 + $0x8] sm:$0xff] %v31
    %48 = vst [vmem:[#allocation2 + $0x10] sm:$0xff] %v32
    %49 = vst [vmem:[#allocation2 + $0x18] sm:$0xff] %v33
    %50 = vst [vmem:[#allocation2 + $0x20] sm:$0xff] %v34
    %51 = vst [vmem:[#allocation2 + $0x28] sm:$0xff] %v35
    %52 = vst [vmem:[#allocation2 + $0x30] sm:$0xff] %v36
    %53 = vst [vmem:[#allocation2 + $0x38] sm:$0xff] %v37
    %54 = vst [vmem:[#allocation2 + $0x40] sm:$0xff] %v38
    %55 = vst [vmem:[#allocation2 + $0x48] sm:$0xff] %v39
    %56 = vst [vmem:[#allocation2 + $0x50] sm:$0xff] %v40
    %57 = vst [vmem:[#allocation2 + $0x58] sm:$0xff] %v41
    %58 = vst [vmem:[#allocation2 + $0x60] sm:$0xff] %v42
    %59 = vst [vmem:[#allocation2 + $0x68] sm:$0xff] %v43
    %60 = vst [vmem:[#allocation2 + $0x70] sm:$0xff] %v44
    %61 = vst [vmem:[#allocation2 + $0x78] sm:$0xff] %v45
  $region29: #{mini_gnn_forward.4} parent=0 // pred_fallthru
    _
  %v62 = vld [vmem:[%s0] sm:$0xff]
  %v63 = vld [vmem:[%s0 + $0x8] sm:$0xff]
  %v64 = vld [vmem:[%s0 + $0x10] sm:$0xff]
  %v65 = vld [vmem:[%s0 + $0x18] sm:$0xff]
  %v66 = vld [vmem:[%s0 + $0x20] sm:$0xff]
  %v67 = vld [vmem:[%s0 + $0x28] sm:$0xff]
  %v68 = vld [vmem:[%s0 + $0x30] sm:$0xff]
  %v69 = vld [vmem:[%s0 + $0x38] sm:$0xff]
  %v70 = vld [vmem:[%s0 + $0x40] sm:$0xff]
  %v71 = vld [vmem:[%s0 + $0x48] sm:$0xff]
  %v72 = vld [vmem:[%s0 + $0x50] sm:$0xff]
  %v73 = vld [vmem:[%s0 + $0x58] sm:$0xff]
  %v74 = vld [vmem:[%s0 + $0x60] sm:$0xff]
  %v75 = vld [vmem:[%s0 + $0x68] sm:$0xff]
  %v76 = vld [vmem:[%s0 + $0x70] sm:$0xff]
  %v77 = vld [vmem:[%s0 + $0x78] sm:$0xff]
  %v78 = vld [vmem:[#allocation2] sm:$0xff]
  %v79 = vld [vmem:[#allocation2 + $0x8] sm:$0xff]
  %v80 = vld [vmem:[#allocation2 + $0x10] sm:$0xff]
  %v81 = vld [vmem:[#allocation2 + $0x18] sm:$0xff]
  %v82 = vld [vmem:[#allocation2 + $0x20] sm:$0xff]
  %v83 = vld [vmem:[#allocation2 + $0x28] sm:$0xff]
  %v84 = vld [vmem:[#allocation2 + $0x30] sm:$0xff]
  %v85 = vld [vmem:[#allocation2 + $0x38] sm:$0xff]
  %v86 = vld [vmem:[#allocation2 + $0x40] sm:$0xff]
  %v87 = vld [vmem:[#allocation2 + $0x48] sm:$0xff]
  %v88 = vld [vmem:[#allocation2 + $0x50] sm:$0xff]
  %v89 = vld [vmem:[#allocation2 + $0x58] sm:$0xff]
  %v90 = vld [vmem:[#allocation2 + $0x60] sm:$0xff]
  %v91 = vld [vmem:[#allocation2 + $0x68] sm:$0xff]
  %v92 = vld [vmem:[#allocation2 + $0x70] sm:$0xff]
  %v93 = vld [vmem:[#allocation2 + $0x78] sm:$0xff]
  %v94 = vld [vmem:[%s2] sm:$0xf]
  %v95 = vld [vmem:[%s2 + $0x4] sm:$0xf]
  %v96 = vld [vmem:[%s2 + $0x8] sm:$0xf]
  %v97 = vld [vmem:[%s2 + $0xc] sm:$0xf]
  %v98 = vld [vmem:[%s2 + $0x10] sm:$0xf]
  %v99 = vld [vmem:[%s2 + $0x14] sm:$0xf]
  %v100 = vld [vmem:[%s2 + $0x18] sm:$0xf]
  %v101 = vld [vmem:[%s2 + $0x1c] sm:$0xf]
  %v102 = vld [vmem:[%s2 + $0x20] sm:$0xf]
  %v103 = vld [vmem:[%s2 + $0x24] sm:$0xf]
  %v104 = vld [vmem:[%s2 + $0x28] sm:$0xf]
  %v105 = vld [vmem:[%s2 + $0x2c] sm:$0xf]
  %v106 = vld [vmem:[%s2 + $0x30] sm:$0xf]
  %v107 = vld [vmem:[%s2 + $0x34] sm:$0xf]
  %v108 = vld [vmem:[%s2 + $0x38] sm:$0xf]
  %v109 = vld [vmem:[%s2 + $0x3c] sm:$0xf]
  %v110 = vld [vmem:[%s3] sm:$0xf]
  %v111 = vld [vmem:[%s3 + $0x4] sm:$0xf]
  %v112 = vld [vmem:[%s3 + $0x8] sm:$0xf]
  %v113 = vld [vmem:[%s3 + $0xc] sm:$0xf]
  %v114 = vld [vmem:[%s3 + $0x10] sm:$0xf]
  %v115 = vld [vmem:[%s3 + $0x14] sm:$0xf]
  %v116 = vld [vmem:[%s3 + $0x18] sm:$0xf]
  %v117 = vld [vmem:[%s3 + $0x1c] sm:$0xf]
  %v118 = vld [vmem:[%s3 + $0x20] sm:$0xf]
  %v119 = vld [vmem:[%s3 + $0x24] sm:$0xf]
  %v120 = vld [vmem:[%s3 + $0x28] sm:$0xf]
  %v121 = vld [vmem:[%s3 + $0x2c] sm:$0xf]
  %v122 = vld [vmem:[%s3 + $0x30] sm:$0xf]
  %v123 = vld [vmem:[%s3 + $0x34] sm:$0xf]
  %v124 = vld [vmem:[%s3 + $0x38] sm:$0xf]
  %v125 = vld [vmem:[%s3 + $0x3c] sm:$0xf]
  %v142 = vunpack.c.l.b16 %v110
  %v143 = vunpack.c.l.b16 %v111
  %v144 = vunpack.c.l.b16 %v112
  %v145 = vunpack.c.l.b16 %v113
  %v146 = vunpack.c.l.b16 %v114
  %v147 = vunpack.c.l.b16 %v115
  %v148 = vunpack.c.l.b16 %v116
  %v149 = vunpack.c.l.b16 %v117
  %v150 = vunpack.c.l.b16 %v118
  %v151 = vunpack.c.l.b16 %v119
  %v152 = vunpack.c.l.b16 %v120
  %v153 = vunpack.c.l.b16 %v121
  %v154 = vunpack.c.l.b16 %v122
  %v155 = vunpack.c.l.b16 %v123
  %v156 = vunpack.c.l.b16 %v124
  %v157 = vunpack.c.l.b16 %v125
  %v158 = vpack.c.b16 %v143, %v142
  %v159 = vpack.c.b16 %v145, %v144
  %v160 = vpack.c.b16 %v147, %v146
  %v161 = vpack.c.b16 %v149, %v148
  %v162 = vpack.c.b16 %v151, %v150
  %v163 = vpack.c.b16 %v153, %v152
  %v164 = vpack.c.b16 %v155, %v154
  %v165 = vpack.c.b16 %v157, %v156
  %v190 = vunpack.c.h.b16 %v62
  %v191 = vunpack.c.h.b16 %v63
  %v192 = vunpack.c.h.b16 %v64
  %v193 = vunpack.c.h.b16 %v65
  %v194 = vunpack.c.h.b16 %v66
  %v195 = vunpack.c.h.b16 %v67
  %v196 = vunpack.c.h.b16 %v68
  %v197 = vunpack.c.h.b16 %v69
  %v198 = vunpack.c.h.b16 %v70
  %v199 = vunpack.c.h.b16 %v71
  %v200 = vunpack.c.h.b16 %v72
  %v201 = vunpack.c.h.b16 %v73
  %v202 = vunpack.c.h.b16 %v74
  %v203 = vunpack.c.h.b16 %v75
  %v204 = vunpack.c.h.b16 %v76
  %v205 = vunpack.c.h.b16 %v77
  %v206 = vpack.c.b16 %v191, %v190
  %v207 = vpack.c.b16 %v193, %v192
  %v208 = vpack.c.b16 %v195, %v194
  %v209 = vpack.c.b16 %v197, %v196
  %v210 = vpack.c.b16 %v199, %v198
  %v211 = vpack.c.b16 %v201, %v200
  %v212 = vpack.c.b16 %v203, %v202
  %v213 = vpack.c.b16 %v205, %v204
  %222 = vmatprep.subr.bf16.mxu0 0
  %223 = vmatpush1.bf16.msra.mxu0 %v213
  %224 = vmatprep.subr.bf16.mxu0 0
  %225 = vmatpush1.bf16.msra.mxu0 %v212
  %226 = vmatprep.subr.bf16.mxu0 0
  %227 = vmatpush1.bf16.msra.mxu0 %v211
  %228 = vmatprep.subr.bf16.mxu0 0
  %229 = vmatpush1.bf16.msra.mxu0 %v210
  %230 = vmatprep.subr.bf16.mxu0 0
  %231 = vmatpush1.bf16.msra.mxu0 %v209
  %232 = vmatprep.subr.bf16.mxu0 0
  %233 = vmatpush1.bf16.msra.mxu0 %v208
  %234 = vmatprep.subr.bf16.mxu0 0
  %235 = vmatpush1.bf16.msra.mxu0 %v207
  %236 = vmatprep.subr.bf16.mxu0 0
  %237 = vmatpush1.bf16.msra.mxu0 %v206
  %238 = vmatprep.subr.bf16.mxu0 0
  %239 = vmatpush2.bf16.msra.mxu0 0
  %240 = vmatprep.subr.bf16.mxu0 0
  %241 = vmatpush2.bf16.msra.mxu0 0
  %242 = vmatprep.subr.bf16.mxu0 0
  %243 = vmatpush2.bf16.msra.mxu0 0
  %244 = vmatprep.subr.bf16.mxu0 0
  %245 = vmatpush2.bf16.msra.mxu0 0
  %246 = vmatprep.subr.bf16.mxu0 0
  %247 = vmatpush2.bf16.msra.mxu0 0
  %248 = vmatprep.subr.bf16.mxu0 0
  %249 = vmatpush2.bf16.msra.mxu0 0
  %250 = vmatprep.subr.bf16.mxu0 0
  %251 = vmatpush2.bf16.msra.mxu0 0
  %252 = vmatprep.subr.bf16.mxu0 0
  %253 = vmatpush2.bf16.msra.mxu0 0
  %254 = vmatprep.mubr.bf16.mxu0 0
  %255 = vmatmul.mubr.bf16.gmra.mxu0 %v158
  %v256 = vpop.f32.mrf.mxu0
  %v257 = vadd.f32 0.0, %v256
  %v258 = vpop.f32.mrf.mxu0
  %v259 = vpop.f32.mrf.mxu0
  %v260 = vadd.f32 0.0, %v259
  %v261 = vpop.f32.mrf.mxu0
  %262 = vmatprep.mubr.bf16.mxu0 0
  %263 = vmatmul.mubr.bf16.gmra.mxu0 %v159
  %v264 = vpop.f32.mrf.mxu0
  %v265 = vadd.f32 0.0, %v264
  %v266 = vpop.f32.mrf.mxu0
  %v267 = vpop.f32.mrf.mxu0
  %v268 = vadd.f32 0.0, %v267
  %v269 = vpop.f32.mrf.mxu0
  %270 = vmatprep.mubr.bf16.mxu0 0
  %271 = vmatmul.mubr.bf16.gmra.mxu0 %v160
  %v272 = vpop.f32.mrf.mxu0
  %v273 = vadd.f32 0.0, %v272
  %v274 = vpop.f32.mrf.mxu0
  %v275 = vpop.f32.mrf.mxu0
  %v276 = vadd.f32 0.0, %v275
  %v277 = vpop.f32.mrf.mxu0
  %278 = vmatprep.mubr.bf16.mxu0 0
  %279 = vmatmul.mubr.bf16.gmra.mxu0 %v161
  %v280 = vpop.f32.mrf.mxu0
  %v281 = vadd.f32 0.0, %v280
  %v282 = vpop.f32.mrf.mxu0
  %v283 = vpop.f32.mrf.mxu0
  %v284 = vadd.f32 0.0, %v283
  %v285 = vpop.f32.mrf.mxu0
  %286 = vmatprep.mubr.bf16.mxu0 0
  %287 = vmatmul.mubr.bf16.gmra.mxu0 %v162
  %v288 = vpop.f32.mrf.mxu0
  %v289 = vadd.f32 0.0, %v288
  %v290 = vpop.f32.mrf.mxu0
  %v291 = vpop.f32.mrf.mxu0
  %v292 = vadd.f32 0.0, %v291
  %v293 = vpop.f32.mrf.mxu0
  %294 = vmatprep.mubr.bf16.mxu0 0
  %295 = vmatmul.mubr.bf16.gmra.mxu0 %v163
  %v296 = vpop.f32.mrf.mxu0
  %v297 = vadd.f32 0.0, %v296
  %v298 = vpop.f32.mrf.mxu0
  %v299 = vpop.f32.mrf.mxu0
  %v300 = vadd.f32 0.0, %v299
  %v301 = vpop.f32.mrf.mxu0
  %302 = vmatprep.mubr.bf16.mxu0 0
  %303 = vmatmul.mubr.bf16.gmra.mxu0 %v164
  %v304 = vpop.f32.mrf.mxu0
  %v305 = vadd.f32 0.0, %v304
  %v306 = vpop.f32.mrf.mxu0
  %v307 = vpop.f32.mrf.mxu0
  %v308 = vadd.f32 0.0, %v307
  %v309 = vpop.f32.mrf.mxu0
  %310 = vmatprep.mubr.bf16.mxu0 0
  %311 = vmatmul.mubr.bf16.gmra.mxu0 %v165
  %v312 = vpop.f32.mrf.mxu0
  %v313 = vadd.f32 0.0, %v312
  %v314 = vpop.f32.mrf.mxu0
  %v315 = vpop.f32.mrf.mxu0
  %v316 = vadd.f32 0.0, %v315
  %v317 = vpop.f32.mrf.mxu0
  %318 = vdwg.mxu0
  %v335 = vunpack.c.l.b16 %v94
  %v336 = vunpack.c.l.b16 %v95
  %v337 = vunpack.c.l.b16 %v96
  %v338 = vunpack.c.l.b16 %v97
  %v339 = vunpack.c.l.b16 %v98
  %v340 = vunpack.c.l.b16 %v99
  %v341 = vunpack.c.l.b16 %v100
  %v342 = vunpack.c.l.b16 %v101
  %v343 = vunpack.c.l.b16 %v102
  %v344 = vunpack.c.l.b16 %v103
  %v345 = vunpack.c.l.b16 %v104
  %v346 = vunpack.c.l.b16 %v105
  %v347 = vunpack.c.l.b16 %v106
  %v348 = vunpack.c.l.b16 %v107
  %v349 = vunpack.c.l.b16 %v108
  %v350 = vunpack.c.l.b16 %v109
  %v351 = vpack.c.b16 %v336, %v335
  %v352 = vpack.c.b16 %v338, %v337
  %v353 = vpack.c.b16 %v340, %v339
  %v354 = vpack.c.b16 %v342, %v341
  %v355 = vpack.c.b16 %v344, %v343
  %v356 = vpack.c.b16 %v346, %v345
  %v357 = vpack.c.b16 %v348, %v347
  %v358 = vpack.c.b16 %v350, %v349
  %v367 = vunpack.c.l.b16 %v62
  %v368 = vunpack.c.l.b16 %v63
  %v369 = vunpack.c.l.b16 %v64
  %v370 = vunpack.c.l.b16 %v65
  %v371 = vunpack.c.l.b16 %v66
  %v372 = vunpack.c.l.b16 %v67
  %v373 = vunpack.c.l.b16 %v68
  %v374 = vunpack.c.l.b16 %v69
  %v375 = vunpack.c.l.b16 %v70
  %v376 = vunpack.c.l.b16 %v71
  %v377 = vunpack.c.l.b16 %v72
  %v378 = vunpack.c.l.b16 %v73
  %v379 = vunpack.c.l.b16 %v74
  %v380 = vunpack.c.l.b16 %v75
  %v381 = vunpack.c.l.b16 %v76
  %v382 = vunpack.c.l.b16 %v77
  %v383 = vpack.c.b16 %v368, %v367
  %v384 = vpack.c.b16 %v370, %v369
  %v385 = vpack.c.b16 %v372, %v371
  %v386 = vpack.c.b16 %v374, %v373
  %v387 = vpack.c.b16 %v376, %v375
  %v388 = vpack.c.b16 %v378, %v377
  %v389 = vpack.c.b16 %v380, %v379
  %v390 = vpack.c.b16 %v382, %v381
  %399 = vmatprep.subr.bf16.mxu0 0
  %400 = vmatpush1.bf16.msra.mxu0 %v390
  %401 = vmatprep.subr.bf16.mxu0 0
  %402 = vmatpush1.bf16.msra.mxu0 %v389
  %403 = vmatprep.subr.bf16.mxu0 0
  %404 = vmatpush1.bf16.msra.mxu0 %v388
  %405 = vmatprep.subr.bf16.mxu0 0
  %406 = vmatpush1.bf16.msra.mxu0 %v387
  %407 = vmatprep.subr.bf16.mxu0 0
  %408 = vmatpush1.bf16.msra.mxu0 %v386
  %409 = vmatprep.subr.bf16.mxu0 0
  %410 = vmatpush1.bf16.msra.mxu0 %v385
  %411 = vmatprep.subr.bf16.mxu0 0
  %412 = vmatpush1.bf16.msra.mxu0 %v384
  %413 = vmatprep.subr.bf16.mxu0 0
  %414 = vmatpush1.bf16.msra.mxu0 %v383
  %415 = vmatprep.subr.bf16.mxu0 0
  %416 = vmatpush2.bf16.msra.mxu0 0
  %417 = vmatprep.subr.bf16.mxu0 0
  %418 = vmatpush2.bf16.msra.mxu0 0
  %419 = vmatprep.subr.bf16.mxu0 0
  %420 = vmatpush2.bf16.msra.mxu0 0
  %421 = vmatprep.subr.bf16.mxu0 0
  %422 = vmatpush2.bf16.msra.mxu0 0
  %423 = vmatprep.subr.bf16.mxu0 0
  %424 = vmatpush2.bf16.msra.mxu0 0
  %425 = vmatprep.subr.bf16.mxu0 0
  %426 = vmatpush2.bf16.msra.mxu0 0
  %427 = vmatprep.subr.bf16.mxu0 0
  %428 = vmatpush2.bf16.msra.mxu0 0
  %429 = vmatprep.subr.bf16.mxu0 0
  %430 = vmatpush2.bf16.msra.mxu0 0
  %431 = vmatprep.mubr.bf16.mxu0 0
  %432 = vmatmul.mubr.bf16.gmra.mxu0 %v351
  %v433 = vpop.f32.mrf.mxu0
  %v434 = vadd.f32 %v257, %v433
  %v435 = vpop.f32.mrf.mxu0
  %v436 = vpop.f32.mrf.mxu0
  %v437 = vadd.f32 %v260, %v436
  %v438 = vpop.f32.mrf.mxu0
  %439 = vmatprep.mubr.bf16.mxu0 0
  %440 = vmatmul.mubr.bf16.gmra.mxu0 %v352
  %v441 = vpop.f32.mrf.mxu0
  %v442 = vadd.f32 %v265, %v441
  %v443 = vpop.f32.mrf.mxu0
  %v444 = vpop.f32.mrf.mxu0
  %v445 = vadd.f32 %v268, %v444
  %v446 = vpop.f32.mrf.mxu0
  %447 = vmatprep.mubr.bf16.mxu0 0
  %448 = vmatmul.mubr.bf16.gmra.mxu0 %v353
  %v449 = vpop.f32.mrf.mxu0
  %v450 = vadd.f32 %v273, %v449
  %v451 = vpop.f32.mrf.mxu0
  %v452 = vpop.f32.mrf.mxu0
  %v453 = vadd.f32 %v276, %v452
  %v454 = vpop.f32.mrf.mxu0
  %455 = vmatprep.mubr.bf16.mxu0 0
  %456 = vmatmul.mubr.bf16.gmra.mxu0 %v354
  %v457 = vpop.f32.mrf.mxu0
  %v458 = vadd.f32 %v281, %v457
  %v459 = vpop.f32.mrf.mxu0
  %v460 = vpop.f32.mrf.mxu0
  %v461 = vadd.f32 %v284, %v460
  %v462 = vpop.f32.mrf.mxu0
  %463 = vmatprep.mubr.bf16.mxu0 0
  %464 = vmatmul.mubr.bf16.gmra.mxu0 %v355
  %v465 = vpop.f32.mrf.mxu0
  %v466 = vadd.f32 %v289, %v465
  %v467 = vpop.f32.mrf.mxu0
  %v468 = vpop.f32.mrf.mxu0
  %v469 = vadd.f32 %v292, %v468
  %v470 = vpop.f32.mrf.mxu0
  %471 = vmatprep.mubr.bf16.mxu0 0
  %472 = vmatmul.mubr.bf16.gmra.mxu0 %v356
  %v473 = vpop.f32.mrf.mxu0
  %v474 = vadd.f32 %v297, %v473
  %v475 = vpop.f32.mrf.mxu0
  %v476 = vpop.f32.mrf.mxu0
  %v477 = vadd.f32 %v300, %v476
  %v478 = vpop.f32.mrf.mxu0
  %479 = vmatprep.mubr.bf16.mxu0 0
  %480 = vmatmul.mubr.bf16.gmra.mxu0 %v357
  %v481 = vpop.f32.mrf.mxu0
  %v482 = vadd.f32 %v305, %v481
  %v483 = vpop.f32.mrf.mxu0
  %v484 = vpop.f32.mrf.mxu0
  %v485 = vadd.f32 %v308, %v484
  %v486 = vpop.f32.mrf.mxu0
  %487 = vmatprep.mubr.bf16.mxu0 0
  %488 = vmatmul.mubr.bf16.gmra.mxu0 %v358
  %v489 = vpop.f32.mrf.mxu0
  %v490 = vadd.f32 %v313, %v489
  %v491 = vpop.f32.mrf.mxu0
  %v492 = vpop.f32.mrf.mxu0
  %v493 = vadd.f32 %v316, %v492
  %v494 = vpop.f32.mrf.mxu0
  %495 = vdwg.mxu0
  %v496 = vadd.f32 %v78, %v434
  %v497 = vadd.f32 %v79, %v437
  %v498 = vadd.f32 %v80, %v442
  %v499 = vadd.f32 %v81, %v445
  %v500 = vadd.f32 %v82, %v450
  %v501 = vadd.f32 %v83, %v453
  %v502 = vadd.f32 %v84, %v458
  %v503 = vadd.f32 %v85, %v461
  %v504 = vadd.f32 %v86, %v466
  %v505 = vadd.f32 %v87, %v469
  %v506 = vadd.f32 %v88, %v474
  %v507 = vadd.f32 %v89, %v477
  %v508 = vadd.f32 %v90, %v482
  %v509 = vadd.f32 %v91, %v485
  %v510 = vadd.f32 %v92, %v490
  %v511 = vadd.f32 %v93, %v493
  %512 = vst [vmem:[#allocation2] sm:$0xff] %v496
  %513 = vst [vmem:[#allocation2 + $0x8] sm:$0xff] %v497
  %514 = vst [vmem:[#allocation2 + $0x10] sm:$0xff] %v498
  %515 = vst [vmem:[#allocation2 + $0x18] sm:$0xff] %v499
  %516 = vst [vmem:[#allocation2 + $0x20] sm:$0xff] %v500
  %517 = vst [vmem:[#allocation2 + $0x28] sm:$0xff] %v501
  %518 = vst [vmem:[#allocation2 + $0x30] sm:$0xff] %v502
  %519 = vst [vmem:[#allocation2 + $0x38] sm:$0xff] %v503
  %520 = vst [vmem:[#allocation2 + $0x40] sm:$0xff] %v504
  %521 = vst [vmem:[#allocation2 + $0x48] sm:$0xff] %v505
  %522 = vst [vmem:[#allocation2 + $0x50] sm:$0xff] %v506
  %523 = vst [vmem:[#allocation2 + $0x58] sm:$0xff] %v507
  %524 = vst [vmem:[#allocation2 + $0x60] sm:$0xff] %v508
  %525 = vst [vmem:[#allocation2 + $0x68] sm:$0xff] %v509
  %526 = vst [vmem:[#allocation2 + $0x70] sm:$0xff] %v510
  %527 = vst [vmem:[#allocation2 + $0x78] sm:$0xff] %v511
  // Predicated region
  $region30: #{mini_gnn_forward.4} parent=0 // pred_check
    %p528 = pneg %p26
  $region31: #{mini_gnn_forward.4} parent=0 // pred_check_branch
    %530 = sbr.rel (%p528) target = $region33
  $region32: #{mini_gnn_forward.4} parent=0 // pred_region
    %v531 = vld [vmem:[#allocation2] sm:$0xff]
    %v532 = vld [vmem:[#allocation2 + $0x8] sm:$0xff]
    %v533 = vld [vmem:[#allocation2 + $0x10] sm:$0xff]
    %v534 = vld [vmem:[#allocation2 + $0x18] sm:$0xff]
    %v535 = vld [vmem:[#allocation2 + $0x20] sm:$0xff]
    %v536 = vld [vmem:[#allocation2 + $0x28] sm:$0xff]
    %v537 = vld [vmem:[#allocation2 + $0x30] sm:$0xff]
    %v538 = vld [vmem:[#allocation2 + $0x38] sm:$0xff]
    %v539 = vld [vmem:[#allocation2 + $0x40] sm:$0xff]
    %v540 = vld [vmem:[#allocation2 + $0x48] sm:$0xff]
    %v541 = vld [vmem:[#allocation2 + $0x50] sm:$0xff]
    %v542 = vld [vmem:[#allocation2 + $0x58] sm:$0xff]
    %v543 = vld [vmem:[#allocation2 + $0x60] sm:$0xff]
    %v544 = vld [vmem:[#allocation2 + $0x68] sm:$0xff]
    %v545 = vld [vmem:[#allocation2 + $0x70] sm:$0xff]
    %v546 = vld [vmem:[#allocation2 + $0x78] sm:$0xff]
    %v547 = vmax.f32 %v531, 0.0
    %v548 = vmax.f32 %v532, 0.0
    %v549 = vmax.f32 %v533, 0.0
    %v550 = vmax.f32 %v534, 0.0
    %v551 = vmax.f32 %v535, 0.0
    %v552 = vmax.f32 %v536, 0.0
    %v553 = vmax.f32 %v537, 0.0
    %v554 = vmax.f32 %v538, 0.0
    %v555 = vmax.f32 %v539, 0.0
    %v556 = vmax.f32 %v540, 0.0
    %v557 = vmax.f32 %v541, 0.0
    %v558 = vmax.f32 %v542, 0.0
    %v559 = vmax.f32 %v543, 0.0
    %v560 = vmax.f32 %v544, 0.0
    %v561 = vmax.f32 %v545, 0.0
    %v562 = vmax.f32 %v546, 0.0
    %v563 = vpack.c.bf16 %v548, %v547
    %v564 = vpack.c.bf16 %v550, %v549
    %v565 = vpack.c.bf16 %v552, %v551
    %v566 = vpack.c.bf16 %v554, %v553
    %v567 = vpack.c.bf16 %v556, %v555
    %v568 = vpack.c.bf16 %v558, %v557
    %v569 = vpack.c.bf16 %v560, %v559
    %v570 = vpack.c.bf16 %v562, %v561
    %v571 = vld [vmem:[%s4] sm:$0xff]
    %v572 = vld [vmem:[%s4 + $0x8] sm:$0xf]
    %v573 = vld [vmem:[%s4 + $0xc] sm:$0xff]
    %v574 = vld [vmem:[%s4 + $0x14] sm:$0xf]
    %v575 = vld [vmem:[%s4 + $0x18] sm:$0xff]
    %v576 = vld [vmem:[%s4 + $0x20] sm:$0xf]
    %v577 = vld [vmem:[%s4 + $0x24] sm:$0xff]
    %v578 = vld [vmem:[%s4 + $0x2c] sm:$0xf]
    %v579 = vld [vmem:[%s4 + $0x30] sm:$0xff]
    %v580 = vld [vmem:[%s4 + $0x38] sm:$0xf]
    %v581 = vld [vmem:[%s4 + $0x3c] sm:$0xff]
    %v582 = vld [vmem:[%s4 + $0x44] sm:$0xf]
    %v583 = vld [vmem:[%s4 + $0x48] sm:$0xff]
    %v584 = vld [vmem:[%s4 + $0x50] sm:$0xf]
    %v585 = vld [vmem:[%s4 + $0x54] sm:$0xff]
    %v586 = vld [vmem:[%s4 + $0x5c] sm:$0xf]
    %v587 = vld [vmem:[%s4 + $0x60] sm:$0xff]
    %v588 = vld [vmem:[%s4 + $0x68] sm:$0xf]
    %v589 = vld [vmem:[%s4 + $0x6c] sm:$0xff]
    %v590 = vld [vmem:[%s4 + $0x74] sm:$0xf]
    %v591 = vld [vmem:[%s4 + $0x78] sm:$0xff]
    %v592 = vld [vmem:[%s4 + $0x80] sm:$0xf]
    %v593 = vld [vmem:[%s4 + $0x84] sm:$0xff]
    %v594 = vld [vmem:[%s4 + $0x8c] sm:$0xf]
    %v595 = vld [vmem:[%s4 + $0x90] sm:$0xff]
    %v596 = vld [vmem:[%s4 + $0x98] sm:$0xf]
    %v597 = vld [vmem:[%s4 + $0x9c] sm:$0xff]
    %v598 = vld [vmem:[%s4 + $0xa4] sm:$0xf]
    %v599 = vld [vmem:[%s4 + $0xa8] sm:$0xff]
    %v600 = vld [vmem:[%s4 + $0xb0] sm:$0xf]
    %v601 = vld [vmem:[%s4 + $0xb4] sm:$0xff]
    %v602 = vld [vmem:[%s4 + $0xbc] sm:$0xf]
    %v635 = vunpack.c.l.b16 %v571
    %v636 = vunpack.c.h.b16 %v571
    %v637 = vunpack.c.l.b16 %v572
    %v638 = vunpack.c.l.b16 %v573
    %v639 = vunpack.c.h.b16 %v573
    %v640 = vunpack.c.l.b16 %v574
    %v641 = vunpack.c.l.b16 %v575
    %v642 = vunpack.c.h.b16 %v575
    %v643 = vunpack.c.l.b16 %v576
    %v644 = vunpack.c.l.b16 %v577
    %v645 = vunpack.c.h.b16 %v577
    %v646 = vunpack.c.l.b16 %v578
    %v647 = vunpack.c.l.b16 %v579
    %v648 = vunpack.c.h.b16 %v579
    %v649 = vunpack.c.l.b16 %v580
    %v650 = vunpack.c.l.b16 %v581
    %v651 = vunpack.c.h.b16 %v581
    %v652 = vunpack.c.l.b16 %v582
    %v653 = vunpack.c.l.b16 %v583
    %v654 = vunpack.c.h.b16 %v583
    %v655 = vunpack.c.l.b16 %v584
    %v656 = vunpack.c.l.b16 %v585
    %v657 = vunpack.c.h.b16 %v585
    %v658 = vunpack.c.l.b16 %v586
    %v659 = vunpack.c.l.b16 %v587
    %v660 = vunpack.c.h.b16 %v587
    %v661 = vunpack.c.l.b16 %v588
    %v662 = vunpack.c.l.b16 %v589
    %v663 = vunpack.c.h.b16 %v589
    %v664 = vunpack.c.l.b16 %v590
    %v665 = vunpack.c.l.b16 %v591
    %v666 = vunpack.c.h.b16 %v591
    %v667 = vunpack.c.l.b16 %v592
    %v668 = vunpack.c.l.b16 %v593
    %v669 = vunpack.c.h.b16 %v593
    %v670 = vunpack.c.l.b16 %v594
    %v671 = vunpack.c.l.b16 %v595
    %v672 = vunpack.c.h.b16 %v595
    %v673 = vunpack.c.l.b16 %v596
    %v674 = vunpack.c.l.b16 %v597
    %v675 = vunpack.c.h.b16 %v597
    %v676 = vunpack.c.l.b16 %v598
    %v677 = vunpack.c.l.b16 %v599
    %v678 = vunpack.c.h.b16 %v599
    %v679 = vunpack.c.l.b16 %v600
    %v680 = vunpack.c.l.b16 %v601
    %v681 = vunpack.c.h.b16 %v601
    %v682 = vunpack.c.l.b16 %v602
    %v683 = vpack.c.b16 %v638, %v635
    %v684 = vpack.c.b16 %v639, %v636
    %v685 = vpack.c.b16 %v640, %v637
    %v686 = vpack.c.b16 %v644, %v641
    %v687 = vpack.c.b16 %v645, %v642
    %v688 = vpack.c.b16 %v646, %v643
    %v689 = vpack.c.b16 %v650, %v647
    %v690 = vpack.c.b16 %v651, %v648
    %v691 = vpack.c.b16 %v652, %v649
    %v692 = vpack.c.b16 %v656, %v653
    %v693 = vpack.c.b16 %v657, %v654
    %v694 = vpack.c.b16 %v658, %v655
    %v695 = vpack.c.b16 %v662, %v659
    %v696 = vpack.c.b16 %v663, %v660
    %v697 = vpack.c.b16 %v664, %v661
    %v698 = vpack.c.b16 %v668, %v665
    %v699 = vpack.c.b16 %v669, %v666
    %v700 = vpack.c.b16 %v670, %v667
    %v701 = vpack.c.b16 %v674, %v671
    %v702 = vpack.c.b16 %v675, %v672
    %v703 = vpack.c.b16 %v676, %v673
    %v704 = vpack.c.b16 %v680, %v677
    %v705 = vpack.c.b16 %v681, %v678
    %v706 = vpack.c.b16 %v682, %v679
    %731 = vmatprep.subr.bf16.mxu0 %v705
    %732 = vmatpush1.bf16.msra.mxu0 %v704
    %733 = vmatprep.subr.bf16.mxu0 %v702
    %734 = vmatpush1.bf16.msra.mxu0 %v701
    %735 = vmatprep.subr.bf16.mxu0 %v699
    %736 = vmatpush1.bf16.msra.mxu0 %v698
    %737 = vmatprep.subr.bf16.mxu0 %v696
    %738 = vmatpush1.bf16.msra.mxu0 %v695
    %739 = vmatprep.subr.bf16.mxu0 %v693
    %740 = vmatpush1.bf16.msra.mxu0 %v692
    %741 = vmatprep.subr.bf16.mxu0 %v690
    %742 = vmatpush1.bf16.msra.mxu0 %v689
    %743 = vmatprep.subr.bf16.mxu0 %v687
    %744 = vmatpush1.bf16.msra.mxu0 %v686
    %745 = vmatprep.subr.bf16.mxu0 %v684
    %746 = vmatpush1.bf16.msra.mxu0 %v683
    %747 = vmatprep.subr.bf16.mxu0 0
    %748 = vmatpush2.bf16.msra.mxu0 0
    %749 = vmatprep.subr.bf16.mxu0 0
    %750 = vmatpush2.bf16.msra.mxu0 0
    %751 = vmatprep.subr.bf16.mxu0 0
    %752 = vmatpush2.bf16.msra.mxu0 0
    %753 = vmatprep.subr.bf16.mxu0 0
    %754 = vmatpush2.bf16.msra.mxu0 0
    %755 = vmatprep.subr.bf16.mxu0 0
    %756 = vmatpush2.bf16.msra.mxu0 0
    %757 = vmatprep.subr.bf16.mxu0 0
    %758 = vmatpush2.bf16.msra.mxu0 0
    %759 = vmatprep.subr.bf16.mxu0 0
    %760 = vmatpush2.bf16.msra.mxu0 0
    %761 = vmatprep.subr.bf16.mxu0 0
    %762 = vmatpush2.bf16.msra.mxu0 0
    %763 = vmatprep.mubr.bf16.mxu0 0
    %764 = vmatmul.mubr.bf16.gmra.mxu0 %v563
    %v765 = vpop.f32.mrf.mxu0
    %v766 = vadd.f32 0.0, %v765
    %v767 = vpop.f32.mrf.mxu0
    %v768 = vadd.f32 0.0, %v767
    %v769 = vpop.f32.mrf.mxu0
    %v770 = vadd.f32 0.0, %v769
    %v771 = vpop.f32.mrf.mxu0
    %v772 = vadd.f32 0.0, %v771
    %773 = vmatprep.mubr.bf16.mxu0 0
    %774 = vmatmul.mubr.bf16.gmra.mxu0 %v564
    %v775 = vpop.f32.mrf.mxu0
    %v776 = vadd.f32 0.0, %v775
    %v777 = vpop.f32.mrf.mxu0
    %v778 = vadd.f32 0.0, %v777
    %v779 = vpop.f32.mrf.mxu0
    %v780 = vadd.f32 0.0, %v779
    %v781 = vpop.f32.mrf.mxu0
    %v782 = vadd.f32 0.0, %v781
    %783 = vmatprep.mubr.bf16.mxu0 0
    %784 = vmatmul.mubr.bf16.gmra.mxu0 %v565
    %v785 = vpop.f32.mrf.mxu0
    %v786 = vadd.f32 0.0, %v785
    %v787 = vpop.f32.mrf.mxu0
    %v788 = vadd.f32 0.0, %v787
    %v789 = vpop.f32.mrf.mxu0
    %v790 = vadd.f32 0.0, %v789
    %v791 = vpop.f32.mrf.mxu0
    %v792 = vadd.f32 0.0, %v791
    %793 = vmatprep.mubr.bf16.mxu0 0
    %794 = vmatmul.mubr.bf16.gmra.mxu0 %v566
    %v795 = vpop.f32.mrf.mxu0
    %v796 = vadd.f32 0.0, %v795
    %v797 = vpop.f32.mrf.mxu0
    %v798 = vadd.f32 0.0, %v797
    %v799 = vpop.f32.mrf.mxu0
    %v800 = vadd.f32 0.0, %v799
    %v801 = vpop.f32.mrf.mxu0
    %v802 = vadd.f32 0.0, %v801
    %803 = vmatprep.mubr.bf16.mxu0 0
    %804 = vmatmul.mubr.bf16.gmra.mxu0 %v567
    %v805 = vpop.f32.mrf.mxu0
    %v806 = vadd.f32 0.0, %v805
    %v807 = vpop.f32.mrf.mxu0
    %v808 = vadd.f32 0.0, %v807
    %v809 = vpop.f32.mrf.mxu0
    %v810 = vadd.f32 0.0, %v809
    %v811 = vpop.f32.mrf.mxu0
    %v812 = vadd.f32 0.0, %v811
    %813 = vmatprep.mubr.bf16.mxu0 0
    %814 = vmatmul.mubr.bf16.gmra.mxu0 %v568
    %v815 = vpop.f32.mrf.mxu0
    %v816 = vadd.f32 0.0, %v815
    %v817 = vpop.f32.mrf.mxu0
    %v818 = vadd.f32 0.0, %v817
    %v819 = vpop.f32.mrf.mxu0
    %v820 = vadd.f32 0.0, %v819
    %v821 = vpop.f32.mrf.mxu0
    %v822 = vadd.f32 0.0, %v821
    %823 = vmatprep.mubr.bf16.mxu0 0
    %824 = vmatmul.mubr.bf16.gmra.mxu0 %v569
    %v825 = vpop.f32.mrf.mxu0
    %v826 = vadd.f32 0.0, %v825
    %v827 = vpop.f32.mrf.mxu0
    %v828 = vadd.f32 0.0, %v827
    %v829 = vpop.f32.mrf.mxu0
    %v830 = vadd.f32 0.0, %v829
    %v831 = vpop.f32.mrf.mxu0
    %v832 = vadd.f32 0.0, %v831
    %833 = vmatprep.mubr.bf16.mxu0 0
    %834 = vmatmul.mubr.bf16.gmra.mxu0 %v570
    %v835 = vpop.f32.mrf.mxu0
    %v836 = vadd.f32 0.0, %v835
    %v837 = vpop.f32.mrf.mxu0
    %v838 = vadd.f32 0.0, %v837
    %v839 = vpop.f32.mrf.mxu0
    %v840 = vadd.f32 0.0, %v839
    %v841 = vpop.f32.mrf.mxu0
    %v842 = vadd.f32 0.0, %v841
    %843 = vdwg.mxu0
    %844 = vmatprep.subr.bf16.mxu0 0
    %845 = vmatpush1.bf16.msra.mxu0 %v706
    %846 = vmatprep.subr.bf16.mxu0 0
    %847 = vmatpush1.bf16.msra.mxu0 %v703
    %848 = vmatprep.subr.bf16.mxu0 0
    %849 = vmatpush1.bf16.msra.mxu0 %v700
    %850 = vmatprep.subr.bf16.mxu0 0
    %851 = vmatpush1.bf16.msra.mxu0 %v697
    %852 = vmatprep.subr.bf16.mxu0 0
    %853 = vmatpush1.bf16.msra.mxu0 %v694
    %854 = vmatprep.subr.bf16.mxu0 0
    %855 = vmatpush1.bf16.msra.mxu0 %v691
    %856 = vmatprep.subr.bf16.mxu0 0
    %857 = vmatpush1.bf16.msra.mxu0 %v688
    %858 = vmatprep.subr.bf16.mxu0 0
    %859 = vmatpush1.bf16.msra.mxu0 %v685
    %860 = vmatprep.subr.bf16.mxu0 0
    %861 = vmatpush2.bf16.msra.mxu0 0
    %862 = vmatprep.subr.bf16.mxu0 0
    %863 = vmatpush2.bf16.msra.mxu0 0
    %864 = vmatprep.subr.bf16.mxu0 0
    %865 = vmatpush2.bf16.msra.mxu0 0
    %866 = vmatprep.subr.bf16.mxu0 0
    %867 = vmatpush2.bf16.msra.mxu0 0
    %868 = vmatprep.subr.bf16.mxu0 0
    %869 = vmatpush2.bf16.msra.mxu0 0
    %870 = vmatprep.subr.bf16.mxu0 0
    %871 = vmatpush2.bf16.msra.mxu0 0
    %872 = vmatprep.subr.bf16.mxu0 0
    %873 = vmatpush2.bf16.msra.mxu0 0
    %874 = vmatprep.subr.bf16.mxu0 0
    %875 = vmatpush2.bf16.msra.mxu0 0
    %876 = vmatprep.mubr.bf16.mxu0 0
    %877 = vmatmul.mubr.bf16.gmra.mxu0 %v563
    %v878 = vpop.f32.mrf.mxu0
    %v879 = vadd.f32 0.0, %v878
    %v880 = vpop.f32.mrf.mxu0
    %v881 = vpop.f32.mrf.mxu0
    %v882 = vadd.f32 0.0, %v881
    %v883 = vpop.f32.mrf.mxu0
    %884 = vmatprep.mubr.bf16.mxu0 0
    %885 = vmatmul.mubr.bf16.gmra.mxu0 %v564
    %v886 = vpop.f32.mrf.mxu0
    %v887 = vadd.f32 0.0, %v886
    %v888 = vpop.f32.mrf.mxu0
    %v889 = vpop.f32.mrf.mxu0
    %v890 = vadd.f32 0.0, %v889
    %v891 = vpop.f32.mrf.mxu0
    %892 = vmatprep.mubr.bf16.mxu0 0
    %893 = vmatmul.mubr.bf16.gmra.mxu0 %v565
    %v894 = vpop.f32.mrf.mxu0
    %v895 = vadd.f32 0.0, %v894
    %v896 = vpop.f32.mrf.mxu0
    %v897 = vpop.f32.mrf.mxu0
    %v898 = vadd.f32 0.0, %v897
    %v899 = vpop.f32.mrf.mxu0
    %900 = vmatprep.mubr.bf16.mxu0 0
    %901 = vmatmul.mubr.bf16.gmra.mxu0 %v566
    %v902 = vpop.f32.mrf.mxu0
    %v903 = vadd.f32 0.0, %v902
    %v904 = vpop.f32.mrf.mxu0
    %v905 = vpop.f32.mrf.mxu0
    %v906 = vadd.f32 0.0, %v905
    %v907 = vpop.f32.mrf.mxu0
    %908 = vmatprep.mubr.bf16.mxu0 0
    %909 = vmatmul.mubr.bf16.gmra.mxu0 %v567
    %v910 = vpop.f32.mrf.mxu0
    %v911 = vadd.f32 0.0, %v910
    %v912 = vpop.f32.mrf.mxu0
    %v913 = vpop.f32.mrf.mxu0
    %v914 = vadd.f32 0.0, %v913
    %v915 = vpop.f32.mrf.mxu0
    %916 = vmatprep.mubr.bf16.mxu0 0
    %917 = vmatmul.mubr.bf16.gmra.mxu0 %v568
    %v918 = vpop.f32.mrf.mxu0
    %v919 = vadd.f32 0.0, %v918
    %v920 = vpop.f32.mrf.mxu0
    %v921 = vpop.f32.mrf.mxu0
    %v922 = vadd.f32 0.0, %v921
    %v923 = vpop.f32.mrf.mxu0
    %924 = vmatprep.mubr.bf16.mxu0 0
    %925 = vmatmul.mubr.bf16.gmra.mxu0 %v569
    %v926 = vpop.f32.mrf.mxu0
    %v927 = vadd.f32 0.0, %v926
    %v928 = vpop.f32.mrf.mxu0
    %v929 = vpop.f32.mrf.mxu0
    %v930 = vadd.f32 0.0, %v929
    %v931 = vpop.f32.mrf.mxu0
    %932 = vmatprep.mubr.bf16.mxu0 0
    %933 = vmatmul.mubr.bf16.gmra.mxu0 %v570
    %v934 = vpop.f32.mrf.mxu0
    %v935 = vadd.f32 0.0, %v934
    %v936 = vpop.f32.mrf.mxu0
    %v937 = vpop.f32.mrf.mxu0
    %v938 = vadd.f32 0.0, %v937
    %v939 = vpop.f32.mrf.mxu0
    %940 = vdwg.mxu0
    %v941 = vpack.c.bf16 %v770, %v766
    %v942 = vpack.c.bf16 %v772, %v768
    %v943 = vpack.c.bf16 %v780, %v776
    %v944 = vpack.c.bf16 %v782, %v778
    %v945 = vpack.c.bf16 %v790, %v786
    %v946 = vpack.c.bf16 %v792, %v788
    %v947 = vpack.c.bf16 %v800, %v796
    %v948 = vpack.c.bf16 %v802, %v798
    %v949 = vpack.c.bf16 %v810, %v806
    %v950 = vpack.c.bf16 %v812, %v808
    %v951 = vpack.c.bf16 %v820, %v816
    %v952 = vpack.c.bf16 %v822, %v818
    %v953 = vpack.c.bf16 %v830, %v826
    %v954 = vpack.c.bf16 %v832, %v828
    %v955 = vpack.c.bf16 %v840, %v836
    %v956 = vpack.c.bf16 %v842, %v838
    %v973 = vunpack.c.l.b16 %v941
    %v974 = vunpack.c.l.b16 %v942
    %v975 = vunpack.c.h.b16 %v941
    %v976 = vunpack.c.h.b16 %v942
    %v977 = vunpack.c.l.b16 %v943
    %v978 = vunpack.c.l.b16 %v944
    %v979 = vunpack.c.h.b16 %v943
    %v980 = vunpack.c.h.b16 %v944
    %v981 = vunpack.c.l.b16 %v945
    %v982 = vunpack.c.l.b16 %v946
    %v983 = vunpack.c.h.b16 %v945
    %v984 = vunpack.c.h.b16 %v946
    %v985 = vunpack.c.l.b16 %v947
    %v986 = vunpack.c.l.b16 %v948
    %v987 = vunpack.c.h.b16 %v947
    %v988 = vunpack.c.h.b16 %v948
    %v989 = vunpack.c.l.b16 %v949
    %v990 = vunpack.c.l.b16 %v950
    %v991 = vunpack.c.h.b16 %v949
    %v992 = vunpack.c.h.b16 %v950
    %v993 = vunpack.c.l.b16 %v951
    %v994 = vunpack.c.l.b16 %v952
    %v995 = vunpack.c.h.b16 %v951
    %v996 = vunpack.c.h.b16 %v952
    %v997 = vunpack.c.l.b16 %v953
    %v998 = vunpack.c.l.b16 %v954
    %v999 = vunpack.c.h.b16 %v953
    %v1000 = vunpack.c.h.b16 %v954
    %v1001 = vunpack.c.l.b16 %v955
    %v1002 = vunpack.c.l.b16 %v956
    %v1003 = vunpack.c.h.b16 %v955
    %v1004 = vunpack.c.h.b16 %v956
    %v1005 = vpack.c.b16 %v974, %v973
    %v1006 = vpack.c.b16 %v976, %v975
    %v1007 = vpack.c.b16 %v978, %v977
    %v1008 = vpack.c.b16 %v980, %v979
    %v1009 = vpack.c.b16 %v982, %v981
    %v1010 = vpack.c.b16 %v984, %v983
    %v1011 = vpack.c.b16 %v986, %v985
    %v1012 = vpack.c.b16 %v988, %v987
    %v1013 = vpack.c.b16 %v990, %v989
    %v1014 = vpack.c.b16 %v992, %v991
    %v1015 = vpack.c.b16 %v994, %v993
    %v1016 = vpack.c.b16 %v996, %v995
    %v1017 = vpack.c.b16 %v998, %v997
    %v1018 = vpack.c.b16 %v1000, %v999
    %v1019 = vpack.c.b16 %v1002, %v1001
    %v1020 = vpack.c.b16 %v1004, %v1003
    %1037 = vst [vmem:[%s6] sm:$0xff] %v1005
    %1038 = vst [vmem:[%s6 + $0x8] sm:$0xff] %v1006
    %1039 = vst [vmem:[%s6 + $0x10] sm:$0xff] %v1007
    %1040 = vst [vmem:[%s6 + $0x18] sm:$0xff] %v1008
    %1041 = vst [vmem:[%s6 + $0x20] sm:$0xff] %v1009
    %1042 = vst [vmem:[%s6 + $0x28] sm:$0xff] %v1010
    %1043 = vst [vmem:[%s6 + $0x30] sm:$0xff] %v1011
    %1044 = vst [vmem:[%s6 + $0x38] sm:$0xff] %v1012
    %1045 = vst [vmem:[%s6 + $0x40] sm:$0xff] %v1013
    %1046 = vst [vmem:[%s6 + $0x48] sm:$0xff] %v1014
    %1047 = vst [vmem:[%s6 + $0x50] sm:$0xff] %v1015
    %1048 = vst [vmem:[%s6 + $0x58] sm:$0xff] %v1016
    %1049 = vst [vmem:[%s6 + $0x60] sm:$0xff] %v1017
    %1050 = vst [vmem:[%s6 + $0x68] sm:$0xff] %v1018
    %1051 = vst [vmem:[%s6 + $0x70] sm:$0xff] %v1019
    %1052 = vst [vmem:[%s6 + $0x78] sm:$0xff] %v1020
    %v1053 = vld [vmem:[%s5] sm:$0x1]
    %v1055 = vlaneseq
    %v1056 = vshrl.u32 %v1055, 7
    %v1057 = vsub.s32 0, %v1056
    %v1058 = vrot.slane %v1053, %v1057
    %v1060 = vadd.f32 %v879, %v1058
    %v1061 = vadd.f32 %v882, %v1058
    %v1062 = vadd.f32 %v887, %v1058
    %v1063 = vadd.f32 %v890, %v1058
    %v1064 = vadd.f32 %v895, %v1058
    %v1065 = vadd.f32 %v898, %v1058
    %v1066 = vadd.f32 %v903, %v1058
    %v1067 = vadd.f32 %v906, %v1058
    %v1068 = vadd.f32 %v911, %v1058
    %v1069 = vadd.f32 %v914, %v1058
    %v1070 = vadd.f32 %v919, %v1058
    %v1071 = vadd.f32 %v922, %v1058
    %v1072 = vadd.f32 %v927, %v1058
    %v1073 = vadd.f32 %v930, %v1058
    %v1074 = vadd.f32 %v935, %v1058
    %v1075 = vadd.f32 %v938, %v1058
    %1076 = vst [vmem:[%s7] sm:$0xff] %v1060
    %1077 = vst [vmem:[%s7 + $0x8] sm:$0xff] %v1061
    %1078 = vst [vmem:[%s7 + $0x10] sm:$0xff] %v1062
    %1079 = vst [vmem:[%s7 + $0x18] sm:$0xff] %v1063
    %1080 = vst [vmem:[%s7 + $0x20] sm:$0xff] %v1064
    %1081 = vst [vmem:[%s7 + $0x28] sm:$0xff] %v1065
    %1082 = vst [vmem:[%s7 + $0x30] sm:$0xff] %v1066
    %1083 = vst [vmem:[%s7 + $0x38] sm:$0xff] %v1067
    %1084 = vst [vmem:[%s7 + $0x40] sm:$0xff] %v1068
    %1085 = vst [vmem:[%s7 + $0x48] sm:$0xff] %v1069
    %1086 = vst [vmem:[%s7 + $0x50] sm:$0xff] %v1070
    %1087 = vst [vmem:[%s7 + $0x58] sm:$0xff] %v1071
    %1088 = vst [vmem:[%s7 + $0x60] sm:$0xff] %v1072
    %1089 = vst [vmem:[%s7 + $0x68] sm:$0xff] %v1073
    %1090 = vst [vmem:[%s7 + $0x70] sm:$0xff] %v1074
    %1091 = vst [vmem:[%s7 + $0x78] sm:$0xff] %v1075
  $region33: #{mini_gnn_forward.4} parent=0 // pred_fallthru
    _
  // Predicated region
  $region34: #{mini_gnn_forward.4} parent=0 // pred_check
    _
  $region35: #{mini_gnn_forward.4} parent=0 // pred_check_branch
    %1093 = sbr.rel (0) target = $region37
  $region36: #{mini_gnn_forward.4} parent=0 // pred_region
    _
  $region37: #{mini_gnn_forward.4} parent=0 // pred_fallthru
    _
  // Predicated region
  $region38: #{mini_gnn_forward.4} parent=0 // pred_check
    _
  $region39: #{mini_gnn_forward.4} parent=0 // pred_check_branch
    %1095 = sbr.rel (0) target = $region41
  $region40: #{mini_gnn_forward.4} parent=0 // pred_region
    _
  $region41: #{mini_gnn_forward.4} parent=0 // pred_fallthru
    _
  // Predicated region
  $region42: #{mini_gnn_forward.4} parent=0 // pred_check
    _
  $region43: #{mini_gnn_forward.4} parent=0 // pred_check_branch
    %1097 = sbr.rel (0) target = $region45
  $region44: #{mini_gnn_forward.4} parent=0 // pred_region
    _
  $region45: #{mini_gnn_forward.4} parent=0 // pred_fallthru
    _
  // Predicated region
  $region46: #{mini_gnn_forward.4} parent=0 // pred_check
    _
  $region47: #{mini_gnn_forward.4} parent=0 // pred_check_branch
    %1099 = sbr.rel (0) target = $region49
  $region48: #{mini_gnn_forward.4} parent=0 // pred_region
    _
  $region49: #{mini_gnn_forward.4} parent=0 // pred_fallthru
    _

</llo_original>
